<compile_context>
chip_gen: v5e
topology: v5e:2x2
jax: 0.10.0
libtpu: 0.0.40
codegen_flags: <defaults>
</compile_context>

<pallas_src>
import math

import numpy as np
import jax
import jax.numpy as jnp
from jax.experimental import pallas as pl
from jax.experimental.pallas import tpu as pltpu

SQRT_HALF = math.sqrt(0.5)
_BF16 = jnp.bfloat16
_F32 = jnp.float32
_LANE = 128


def _round_up(n, m=_LANE):
    return ((n + m - 1) // m) * m


def _pad_trailing(a, *targets):
    """Zero-pad the trailing len(targets) dims of `a` up to `targets`."""
    nd = a.ndim
    k = len(targets)
    pads = [(0, 0)] * (nd - k)
    for cur, tgt in zip(a.shape[nd - k:], targets):
        pads.append((0, tgt - cur))
    return jnp.pad(a, pads)


# ----------------------------------------------------------------------------
# Parameter setup (plain JAX / numpy glue)
# ----------------------------------------------------------------------------
def position_encoding_init(n_position, d_pos_vec, position_rate=1.0):
    """Sinusoid position encoding table (matches the PyTorch reference)."""
    position_enc = np.array(
        [[position_rate * pos / np.power(10000, 2 * i / d_pos_vec) for i in range(d_pos_vec)]
         if pos != 0 else np.zeros(d_pos_vec)
         for pos in range(n_position)])
    position_enc[1:, 0::2] = np.sin(position_enc[1:, 0::2])
    position_enc[1:, 1::2] = np.cos(position_enc[1:, 1::2])
    return jnp.asarray(position_enc, dtype=jnp.float32)


def init_decoder_params(key, *, embed_dim, in_dim, r, conv_channels, kernel_size,
                        num_layers, max_positions, dropout=0.1,
                        query_position_rate=1.0, key_position_rate=1.29):
    in_channels = in_dim * r
    C, E, L, K = conv_channels, embed_dim, num_layers, kernel_size
    params = {}
    params["pe_keys"] = position_encoding_init(max_positions, E, key_position_rate)
    params["pe_query"] = position_encoding_init(max_positions, C, query_position_rate)

    keys = jax.random.split(key, 4 + 2 * L)
    kit = iter(keys)

    def lin_w(k_, cin, cout, drop=0.0):
        std = math.sqrt((1.0 - drop) / cin)
        return (std * jax.random.normal(k_, (cin, cout))).astype(jnp.float32)

    # fc1: Linear(in_dim*r -> C); bias zero-init (weight_norm is a reparam only)
    params["fc1_w"] = lin_w(next(kit), in_channels, C, dropout)
    params["fc1_b"] = jnp.zeros((1, C), jnp.float32)

    # ConvTBC weights, layout (kernel, in_channels, out_channels=2C), stacked over layers
    conv_std = math.sqrt(4.0 * (1.0 - dropout) / (K * C))
    params["conv_w"] = (conv_std *
                        jax.random.normal(next(kit), (L, K, C, 2 * C))).astype(jnp.float32)
    params["conv_b"] = jnp.zeros((L, 1, 2 * C), jnp.float32)

    # AttentionLayer projections, stacked over layers
    params["wi"] = jnp.stack([lin_w(next(kit), C, E) for _ in range(L)])
    params["bi"] = jnp.zeros((L, 1, E), jnp.float32)
    params["wo"] = jnp.stack([lin_w(next(kit), E, C) for _ in range(L)])
    params["bo"] = jnp.zeros((L, 1, C), jnp.float32)

    params["fc2_w"] = lin_w(next(kit), C, in_dim * r)
    params["fc2_b"] = jnp.zeros((1, in_dim * r), jnp.float32)
    params["fc3_w"] = lin_w(next(kit), C, 1)
    params["fc3_b"] = jnp.zeros((1, 1), jnp.float32)
    return params


# ----------------------------------------------------------------------------
# Fused decoder-stack Pallas kernel (one grid program per batch element)
# ----------------------------------------------------------------------------
def _make_decoder_kernel(S_real, K):
    def kernel(x_ref, keys_ref, vals_ref, fpos_ref,
               fc1w_ref, fc1b_ref, convw_ref, convb_ref,
               wi_ref, bi_ref, wo_ref, bo_ref,
               fc23w_ref, fc23b_ref,
               out_ref, attn_ref, ds_ref):
        _, T, Cp = fpos_ref.shape                    # padded channel dim
        _, Sp, _Ep = keys_ref.shape                  # padded source / embed dims
        L = wi_ref.shape[0]

        def mm(a, w):
            # MXU matmul: bf16 operands, f32 accumulation.
            return jnp.dot(a.astype(_BF16), w, preferred_element_type=_F32)

        keys = keys_ref[0]                           # (Sp, Ep) bf16
        vals = vals_ref[0]                           # (Sp, Ep) bf16
        fpos = fpos_ref[0]                           # (T, Cp) f32

        # fc1 + ReLU (input dropout: eval mode => identity)
        x0 = jnp.maximum(mm(x_ref[0], fc1w_ref[...]) + fc1b_ref[...], 0.0)

        t_ids = jax.lax.broadcasted_iota(jnp.int32, (T, 1), 0)
        col_ok = None
        if Sp > S_real:                              # mask padded source columns
            col_ok = jax.lax.broadcasted_iota(jnp.int32, (T, Sp), 1) < S_real

        def layer(l, x):
            residual = x                             # in==out channels => no projection
            # --- causal ConvTBC via roll-based im2col -> ONE matmul + GLU ---
            taps = []
            for j in range(K):                       # static unroll over taps
                d = K - 1 - j                        # causal shift for tap j
                if d == 0:
                    xs = x
                else:
                    xs = jnp.where(t_ids >= d, pltpu.roll(x, d, axis=0), 0.0)
                taps.append(xs.astype(_BF16))
            xim = taps[0] if K == 1 else jnp.concatenate(taps, axis=1)  # (T, K*Cp)
            acc = jnp.dot(xim, convw_ref[l], preferred_element_type=_F32)
            acc = acc + convb_ref[l]                 # (T, 2*Cp)
            xg = acc[:, :Cp] * jax.nn.sigmoid(acc[:, Cp:])   # GLU (f32)

            # --- attention (query = GLU output + frame position embedding) ---
            q = xg + fpos                            # (T, Cp)
            xi = mm(q, wi_ref[l]) + bi_ref[l]        # (T, Ep)
            scores = jax.lax.dot_general(            # contract on E: no transpose
                xi.astype(_BF16), keys,
                dimension_numbers=(((1,), (1,)), ((), ())),
                preferred_element_type=_F32)         # (T, Sp)
            if col_ok is not None:
                scores = jnp.where(col_ok, scores, -1e30)
            m = jnp.max(scores, axis=-1, keepdims=True)
            e = jnp.exp(scores - m)
            denom = jnp.sum(e, axis=-1, keepdims=True)
            p = e * pl.reciprocal(denom, approx=True)          # softmax (f32)
            attn_ref[l] = p.reshape(1, T, Sp).astype(attn_ref.dtype)
            # attention dropout: eval => identity; sqrt(S) scale folded into wo
            ctx = mm(p, vals)                        # (T, Ep)
            out = mm(ctx, wo_ref[l]) + bo_ref[l]     # (T, Cp)
            # AttentionLayer internal residual, then decoder-layer residual
            return ((out + q) * SQRT_HALF + residual) * SQRT_HALF

        x = jax.lax.fori_loop(0, L, layer, x0)

        ds_ref[0] = x.astype(ds_ref.dtype)
        # fused fc2 / fc3 + sigmoid; the two outputs are sliced apart outside
        y = jax.nn.sigmoid(mm(x, fc23w_ref[...]) + fc23b_ref[...])   # (T, Np)
        out_ref[0] = y.astype(out_ref.dtype)

    return kernel


# ----------------------------------------------------------------------------
# Decoder forward (thin JAX wrapper: pad to lane-dense shapes, one pallas_call)
# ----------------------------------------------------------------------------
def decoder_forward(params, encoder_out, inputs, text_positions, frame_positions,
                    *, in_dim, r):
    keys, values = encoder_out                       # (B, S, E) each
    B, S, E = keys.shape
    if inputs.shape[-1] == in_dim:                   # frame-level mels -> group by r
        inputs = inputs.reshape(B, inputs.shape[1] // r, in_dim * r)
    assert inputs.shape[-1] == in_dim * r
    T = inputs.shape[1]
    C = params["fc1_w"].shape[1]
    L, K = params["conv_w"].shape[:2]
    out_dim = in_dim * r

    # lane-dense padded sizes
    Cp, Ep, Sp = _round_up(C), _round_up(E), _round_up(S)
    INp, Np = _round_up(out_dim), _round_up(out_dim + 1)

    # position-embedding lookups (gathers) stay in plain JAX glue (tiny)
    keys = keys + jnp.take(params["pe_keys"], text_positions, axis=0)   # (B, S, E)
    fpos = jnp.take(params["pe_query"], frame_positions, axis=0)        # (B, T, C)

    # activations: zero-pad lane dims, bf16 for MXU operands
    x_in = _pad_trailing(inputs, INp).astype(_BF16)           # (B, T, INp)
    keys_b = _pad_trailing(keys, Sp, Ep).astype(_BF16)        # (B, Sp, Ep)
    vals_b = _pad_trailing(values, Sp, Ep).astype(_BF16)      # (B, Sp, Ep)
    fpos_p = _pad_trailing(fpos, Cp)                          # (B, T, Cp) f32

    # weights: zero-pad lane/K dims, bf16; biases stay f32
    fc1_w = _pad_trailing(params["fc1_w"], INp, Cp).astype(_BF16)
    fc1_b = _pad_trailing(params["fc1_b"], Cp)

    # conv: (L,K,C,2C) -> (L, K*Cp, 2*Cp), GLU halves mapped to [0:C] / [Cp:Cp+C]
    cw = params["conv_w"]
    cw_pad = jnp.zeros((L, K, Cp, 2 * Cp), _F32)
    cw_pad = cw_pad.at[:, :, :C, :C].set(cw[..., :C])
    cw_pad = cw_pad.at[:, :, :C, Cp:Cp + C].set(cw[..., C:])
    conv_w = cw_pad.reshape(L, K * Cp, 2 * Cp).astype(_BF16)
    cb = params["conv_b"]
    conv_b = jnp.zeros((L, 1, 2 * Cp), _F32)
    conv_b = conv_b.at[:, :, :C].set(cb[..., :C])
    conv_b = conv_b.at[:, :, Cp:Cp + C].set(cb[..., C:])

    wi = _pad_trailing(params["wi"], Cp, Ep).astype(_BF16)
    bi = _pad_trailing(params["bi"], Ep)
    # fold the s*sqrt(1/s)=sqrt(S) context scale into the output projection
    wo = _pad_trailing(params["wo"] * math.sqrt(S), Ep, Cp).astype(_BF16)
    bo = _pad_trailing(params["bo"], Cp)

    # fuse fc2/fc3 into one lane-dense matmul; slice outputs afterwards
    fc23_w = jnp.concatenate([params["fc2_w"], params["fc3_w"]], axis=1)
    fc23_w = _pad_trailing(fc23_w, Cp, Np).astype(_BF16)
    fc23_b = _pad_trailing(
        jnp.concatenate([params["fc2_b"], params["fc3_b"]], axis=1), Np)

    def batch_spec(shape):
        blk = (1,) + tuple(shape[1:])
        return pl.BlockSpec(blk, lambda b: (b,) + (0,) * (len(shape) - 1))

    def const_spec(shape):
        zeros = (0,) * len(shape)
        return pl.BlockSpec(tuple(shape), lambda b: zeros)

    out23, attn, dstates = pl.pallas_call(
        _make_decoder_kernel(S, K),
        out_shape=(jax.ShapeDtypeStruct((B, T, Np), _F32),
                   jax.ShapeDtypeStruct((L, B, T, Sp), _BF16),
                   jax.ShapeDtypeStruct((B, T, Cp), _F32)),
        grid=(B,),
        in_specs=[batch_spec((B, T, INp)),
                  batch_spec((B, Sp, Ep)),
                  batch_spec((B, Sp, Ep)),
                  batch_spec((B, T, Cp)),
                  const_spec((INp, Cp)), const_spec((1, Cp)),
                  const_spec((L, K * Cp, 2 * Cp)), const_spec((L, 1, 2 * Cp)),
                  const_spec((L, Cp, Ep)), const_spec((L, 1, Ep)),
                  const_spec((L, Ep, Cp)), const_spec((L, 1, Cp)),
                  const_spec((Cp, Np)), const_spec((1, Np))],
        out_specs=(batch_spec((B, T, Np)),
                   pl.BlockSpec((L, 1, T, Sp), lambda b: (0, b, 0, 0)),
                   batch_spec((B, T, Cp))),
        compiler_params=pltpu.CompilerParams(
            dimension_semantics=("parallel",),
            vmem_limit_bytes=48 * 1024 * 1024),
    )(x_in, keys_b, vals_b, fpos_p,
      fc1_w, fc1_b, conv_w, conv_b,
      wi, bi, wo, bo, fc23_w, fc23_b)

    outputs = out23[..., :out_dim]                   # sigmoid(fc2(decoder_states))
    done = out23[..., out_dim:out_dim + 1]           # sigmoid(fc3(decoder_states))
    alignments = attn[..., :S].astype(_F32)
    decoder_states = dstates[..., :C]
    return outputs, alignments, done, decoder_states


# ----------------------------------------------------------------------------
if __name__ == "__main__":
    # small, self-consistent shapes
    B = 2            # batch
    S = 8            # encoder timesteps
    T = 8            # decoder (grouped) timesteps
    E = 32           # embed_dim
    in_dim, r = 8, 2
    C = 32           # conv channels
    ksz = 3          # conv kernel size
    num_layers = 2
    max_positions = 64

    root = jax.random.PRNGKey(0)
    kp, kk, kv, ki = jax.random.split(root, 4)

    params = init_decoder_params(
        kp, embed_dim=E, in_dim=in_dim, r=r, conv_channels=C, kernel_size=ksz,
        num_layers=num_layers, max_positions=max_positions)

    keys_enc = jax.random.normal(kk, (B, S, E), jnp.float32)
    values_enc = jax.random.normal(kv, (B, S, E), jnp.float32)
    inputs = jax.random.normal(ki, (B, T * r, in_dim), jnp.float32)   # frame-level mels
    text_positions = jnp.tile(jnp.arange(1, S + 1, dtype=jnp.int32)[None, :], (B, 1))
    frame_positions = jnp.tile(jnp.arange(1, T + 1, dtype=jnp.int32)[None, :], (B, 1))

    outputs, alignments, done, decoder_states = decoder_forward(
        params, (keys_enc, values_enc), inputs, text_positions, frame_positions,
        in_dim=in_dim, r=r)
    jax.block_until_ready((outputs, alignments, done, decoder_states))

    assert outputs.shape == (B, T, in_dim * r)
    assert alignments.shape == (num_layers, B, T, S)
    assert done.shape == (B, T, 1)
    assert decoder_states.shape == (B, T, C)
    assert bool(jnp.all(jnp.isfinite(outputs)))
    assert bool(jnp.all(jnp.isfinite(alignments)))
    assert bool(jnp.all(jnp.isfinite(done)))
    # attention rows must sum to ~1 over the real (unpadded) source positions
    assert bool(jnp.all(jnp.abs(jnp.sum(alignments, axis=-1) - 1.0) < 1e-2))
    print("KERNEL_OK")
</pallas_src>

<mosaic_0001>
module attributes {stable_mosaic.version = 11 : i64} {
  func.func @kernel(%arg0: i32, %arg1: memref<1x8x128xbf16, #tpu.memory_space<vmem>>, %arg2: memref<1x128x128xbf16, #tpu.memory_space<vmem>>, %arg3: memref<1x128x128xbf16, #tpu.memory_space<vmem>>, %arg4: memref<1x8x128xf32, #tpu.memory_space<vmem>>, %arg5: memref<128x128xbf16, #tpu.memory_space<vmem>>, %arg6: memref<1x128xf32, #tpu.memory_space<vmem>>, %arg7: memref<2x384x256xbf16, #tpu.memory_space<vmem>>, %arg8: memref<2x1x256xf32, #tpu.memory_space<vmem>>, %arg9: memref<2x128x128xbf16, #tpu.memory_space<vmem>>, %arg10: memref<2x1x128xf32, #tpu.memory_space<vmem>>, %arg11: memref<2x128x128xbf16, #tpu.memory_space<vmem>>, %arg12: memref<2x1x128xf32, #tpu.memory_space<vmem>>, %arg13: memref<128x128xbf16, #tpu.memory_space<vmem>>, %arg14: memref<1x128xf32, #tpu.memory_space<vmem>>, %arg15: memref<1x8x128xf32, #tpu.memory_space<vmem>>, %arg16: memref<2x1x8x128xbf16, #tpu.memory_space<vmem>>, %arg17: memref<1x8x128xf32, #tpu.memory_space<vmem>>) attributes {dimension_semantics = [#tpu.dimension_semantics<parallel>], iteration_bounds = array<i64: 2>, scalar_prefetch = 0 : i64, scratch_operands = 0 : i64, tpu.core_type = #tpu.core_type<tc>, window_params = [{transform_indices = @transform_0, window_bounds = array<i64: 1, 8, 128>}, {transform_indices = @transform_1, window_bounds = array<i64: 1, 128, 128>}, {transform_indices = @transform_2, window_bounds = array<i64: 1, 128, 128>}, {transform_indices = @transform_3, window_bounds = array<i64: 1, 8, 128>}, {pipeline_mode = #tpu.pipeline_mode<synchronous>, transform_indices = @transform_4, window_bounds = array<i64: 128, 128>}, {pipeline_mode = #tpu.pipeline_mode<synchronous>, transform_indices = @transform_5, window_bounds = array<i64: 1, 128>}, {pipeline_mode = #tpu.pipeline_mode<synchronous>, transform_indices = @transform_6, window_bounds = array<i64: 2, 384, 256>}, {pipeline_mode = #tpu.pipeline_mode<synchronous>, transform_indices = @transform_7, window_bounds = array<i64: 2, 1, 256>}, {pipeline_mode = #tpu.pipeline_mode<synchronous>, transform_indices = @transform_8, window_bounds = array<i64: 2, 128, 128>}, {pipeline_mode = #tpu.pipeline_mode<synchronous>, transform_indices = @transform_9, window_bounds = array<i64: 2, 1, 128>}, {pipeline_mode = #tpu.pipeline_mode<synchronous>, transform_indices = @transform_10, window_bounds = array<i64: 2, 128, 128>}, {pipeline_mode = #tpu.pipeline_mode<synchronous>, transform_indices = @transform_11, window_bounds = array<i64: 2, 1, 128>}, {pipeline_mode = #tpu.pipeline_mode<synchronous>, transform_indices = @transform_12, window_bounds = array<i64: 128, 128>}, {pipeline_mode = #tpu.pipeline_mode<synchronous>, transform_indices = @transform_13, window_bounds = array<i64: 1, 128>}, {transform_indices = @transform_14, window_bounds = array<i64: 1, 8, 128>}, {transform_indices = @transform_15, window_bounds = array<i64: 2, 1, 8, 128>}, {transform_indices = @transform_16, window_bounds = array<i64: 1, 8, 128>}]} {
    %c0 = arith.constant 0 : index
    %c0_0 = arith.constant 0 : index
    %c0_1 = arith.constant 0 : index
    %0 = vector.load %arg2[%c0, %c0_0, %c0_1] : memref<1x128x128xbf16, #tpu.memory_space<vmem>>, vector<1x128x128xbf16>
    %1 = vector.shape_cast %0 : vector<1x128x128xbf16> to vector<128x128xbf16>
    %c0_2 = arith.constant 0 : index
    %c0_3 = arith.constant 0 : index
    %c0_4 = arith.constant 0 : index
    %2 = vector.load %arg3[%c0_2, %c0_3, %c0_4] : memref<1x128x128xbf16, #tpu.memory_space<vmem>>, vector<1x128x128xbf16>
    %3 = vector.shape_cast %2 : vector<1x128x128xbf16> to vector<128x128xbf16>
    %c0_5 = arith.constant 0 : index
    %c0_6 = arith.constant 0 : index
    %c0_7 = arith.constant 0 : index
    %4 = vector.load %arg4[%c0_5, %c0_6, %c0_7] : memref<1x8x128xf32, #tpu.memory_space<vmem>>, vector<1x8x128xf32>
    %5 = vector.shape_cast %4 : vector<1x8x128xf32> to vector<8x128xf32>
    %c0_8 = arith.constant 0 : index
    %c0_9 = arith.constant 0 : index
    %c0_10 = arith.constant 0 : index
    %6 = vector.load %arg1[%c0_8, %c0_9, %c0_10] : memref<1x8x128xbf16, #tpu.memory_space<vmem>>, vector<1x8x128xbf16>
    %7 = vector.shape_cast %6 : vector<1x8x128xbf16> to vector<8x128xbf16>
    %c0_11 = arith.constant 0 : index
    %c0_12 = arith.constant 0 : index
    %8 = vector.load %arg5[%c0_11, %c0_12] : memref<128x128xbf16, #tpu.memory_space<vmem>>, vector<128x128xbf16>
    %cst = arith.constant dense<0.000000e+00> : vector<8x128xf32>
    %9 = tpu.matmul %7, %8, %cst {dimension_numbers = #tpu.dot_dimension_numbers<[1], [0], [0], [1], [0, 0, 1, 1], [], []>} : vector<8x128xbf16>, vector<128x128xbf16>, vector<8x128xf32> -> vector<8x128xf32>
    %c0_13 = arith.constant 0 : index
    %c0_14 = arith.constant 0 : index
    %10 = vector.load %arg6[%c0_13, %c0_14] : memref<1x128xf32, #tpu.memory_space<vmem>>, vector<1x128xf32>
    %11 = vector.broadcast %10 : vector<1x128xf32> to vector<8x128xf32>
    %12 = arith.addf %9, %11 : vector<8x128xf32>
    %cst_15 = arith.constant 0.000000e+00 : f32
    %13 = vector.broadcast %cst_15 : f32 to vector<8x128xf32>
    %14 = arith.maximumf %12, %13 : vector<8x128xf32>
    %15 = tpu.iota {dimensions = array<i32: 0>} : vector<8x1xi32>
    %16 = tpu.iota {dimensions = array<i32: 1>} : vector<8x128xi32>
    %c8_i32 = arith.constant 8 : i32
    %17 = vector.broadcast %c8_i32 : i32 to vector<8x128xi32>
    %18 = arith.cmpi slt, %16, %17 : vector<8x128xi32>
    %c0_i32 = arith.constant 0 : i32
    %c2_i32 = arith.constant 2 : i32
    %19 = arith.addi %c0_i32, %c2_i32 : i32
    %c1_i32 = arith.constant 1 : i32
    %20 = scf.for %arg18 = %c0_i32 to %19 step %c1_i32 iter_args(%arg19 = %14) -> (vector<8x128xf32>)  : i32 {
      %c2_i32_29 = arith.constant 2 : i32
      %38 = vector.broadcast %c2_i32_29 : i32 to vector<8x1xi32>
      %39 = arith.cmpi sge, %15, %38 : vector<8x1xi32>
      %c2_i32_30 = arith.constant 2 : i32
      %40 = tpu.dynamic_rotate %arg19 by %c2_i32_30 dim 0 : vector<8x128xf32>, i32 -> vector<8x128xf32>
      %cst_31 = arith.constant 0.000000e+00 : f32
      %41 = vector.shape_cast %39 : vector<8x1xi1> to vector<8x1xi1>
      %42 = vector.broadcast %41 : vector<8x1xi1> to vector<8x128xi1>
      %43 = vector.broadcast %cst_31 : f32 to vector<8x128xf32>
      %44 = arith.select %42, %40, %43 : vector<8x128xi1>, vector<8x128xf32>
      %45 = arith.truncf %44 : vector<8x128xf32> to vector<8x128xbf16>
      %c1_i32_32 = arith.constant 1 : i32
      %46 = vector.broadcast %c1_i32_32 : i32 to vector<8x1xi32>
      %47 = arith.cmpi sge, %15, %46 : vector<8x1xi32>
      %c1_i32_33 = arith.constant 1 : i32
      %48 = tpu.dynamic_rotate %arg19 by %c1_i32_33 dim 0 : vector<8x128xf32>, i32 -> vector<8x128xf32>
      %cst_34 = arith.constant 0.000000e+00 : f32
      %49 = vector.shape_cast %47 : vector<8x1xi1> to vector<8x1xi1>
      %50 = vector.broadcast %49 : vector<8x1xi1> to vector<8x128xi1>
      %51 = vector.broadcast %cst_34 : f32 to vector<8x128xf32>
      %52 = arith.select %50, %48, %51 : vector<8x128xi1>, vector<8x128xf32>
      %53 = arith.truncf %52 : vector<8x128xf32> to vector<8x128xbf16>
      %54 = arith.truncf %arg19 : vector<8x128xf32> to vector<8x128xbf16>
      %55 = tpu.concatenate %45, %53, %54 in 1 : vector<8x128xbf16>, vector<8x128xbf16>, vector<8x128xbf16> -> vector<8x384xbf16>
      %56 = arith.index_cast %arg18 : i32 to index
      %c0_35 = arith.constant 0 : index
      %c0_36 = arith.constant 0 : index
      %57 = vector.load %arg7[%56, %c0_35, %c0_36] : memref<2x384x256xbf16, #tpu.memory_space<vmem>>, vector<1x384x256xbf16>
      %58 = vector.shape_cast %57 : vector<1x384x256xbf16> to vector<384x256xbf16>
      %cst_37 = arith.constant dense<0.000000e+00> : vector<8x256xf32>
      %59 = tpu.matmul %55, %58, %cst_37 {dimension_numbers = #tpu.dot_dimension_numbers<[1], [0], [0], [1], [0, 0, 1, 1], [], []>} : vector<8x384xbf16>, vector<384x256xbf16>, vector<8x256xf32> -> vector<8x256xf32>
      %60 = arith.index_cast %arg18 : i32 to index
      %c0_38 = arith.constant 0 : index
      %c0_39 = arith.constant 0 : index
      %61 = vector.load %arg8[%60, %c0_38, %c0_39] : memref<2x1x256xf32, #tpu.memory_space<vmem>>, vector<1x1x256xf32>
      %62 = vector.shape_cast %61 : vector<1x1x256xf32> to vector<1x256xf32>
      %63 = vector.broadcast %62 : vector<1x256xf32> to vector<8x256xf32>
      %64 = arith.addf %59, %63 : vector<8x256xf32>
      %65 = vector.extract_strided_slice %64 {offsets = [0, 0], sizes = [8, 128], strides = [1, 1]} : vector<8x256xf32> to vector<8x128xf32>
      %66 = vector.extract_strided_slice %64 {offsets = [0, 128], sizes = [8, 128], strides = [1, 1]} : vector<8x256xf32> to vector<8x128xf32>
      %67 = arith.negf %66 : vector<8x128xf32>
      %68 = math.exp %67 : vector<8x128xf32>
      %cst_40 = arith.constant 1.000000e+00 : f32
      %69 = vector.broadcast %cst_40 : f32 to vector<8x128xf32>
      %70 = arith.addf %69, %68 : vector<8x128xf32>
      %71 = arith.divf %69, %70 : vector<8x128xf32>
      %72 = arith.mulf %65, %71 : vector<8x128xf32>
      %73 = arith.addf %72, %5 : vector<8x128xf32>
      %74 = arith.index_cast %arg18 : i32 to index
      %c0_41 = arith.constant 0 : index
      %c0_42 = arith.constant 0 : index
      %75 = vector.load %arg9[%74, %c0_41, %c0_42] : memref<2x128x128xbf16, #tpu.memory_space<vmem>>, vector<1x128x128xbf16>
      %76 = vector.shape_cast %75 : vector<1x128x128xbf16> to vector<128x128xbf16>
      %77 = arith.truncf %73 : vector<8x128xf32> to vector<8x128xbf16>
      %cst_43 = arith.constant dense<0.000000e+00> : vector<8x128xf32>
      %78 = tpu.matmul %77, %76, %cst_43 {dimension_numbers = #tpu.dot_dimension_numbers<[1], [0], [0], [1], [0, 0, 1, 1], [], []>} : vector<8x128xbf16>, vector<128x128xbf16>, vector<8x128xf32> -> vector<8x128xf32>
      %79 = arith.index_cast %arg18 : i32 to index
      %c0_44 = arith.constant 0 : index
      %c0_45 = arith.constant 0 : index
      %80 = vector.load %arg10[%79, %c0_44, %c0_45] : memref<2x1x128xf32, #tpu.memory_space<vmem>>, vector<1x1x128xf32>
      %81 = vector.shape_cast %80 : vector<1x1x128xf32> to vector<1x128xf32>
      %82 = vector.broadcast %81 : vector<1x128xf32> to vector<8x128xf32>
      %83 = arith.addf %78, %82 : vector<8x128xf32>
      %84 = arith.truncf %83 : vector<8x128xf32> to vector<8x128xbf16>
      %cst_46 = arith.constant dense<0.000000e+00> : vector<8x128xf32>
      %85 = tpu.matmul %84, %1, %cst_46 {dimension_numbers = #tpu.dot_dimension_numbers<[1], [1], [0], [0], [0, 0, 1, 0], [], []>} : vector<8x128xbf16>, vector<128x128xbf16>, vector<8x128xf32> -> vector<8x128xf32>
      %cst_47 = arith.constant -1.000000e+30 : f32
      %86 = vector.broadcast %cst_47 : f32 to vector<8x128xf32>
      %87 = arith.select %18, %85, %86 : vector<8x128xi1>, vector<8x128xf32>
      %cst_48 = arith.constant dense<0xFF800000> : vector<8xf32>
      %88 = vector.multi_reduction <maximumf>, %87, %cst_48 [1] : vector<8x128xf32> to vector<8xf32>
      %89 = vector.shape_cast %88 : vector<8xf32> to vector<8x1xf32>
      %90 = vector.broadcast %89 : vector<8x1xf32> to vector<8x128xf32>
      %91 = arith.subf %87, %90 : vector<8x128xf32>
      %92 = math.exp %91 : vector<8x128xf32>
      %cst_49 = arith.constant dense<0.000000e+00> : vector<8xf32>
      %93 = vector.multi_reduction <add>, %92, %cst_49 [1] : vector<8x128xf32> to vector<8xf32>
      %94 = vector.shape_cast %93 : vector<8xf32> to vector<8x1xf32>
      %95 = tpu.reciprocal %94 {approx = true} : vector<8x1xf32> -> vector<8x1xf32>
      %96 = vector.broadcast %95 : vector<8x1xf32> to vector<8x128xf32>
      %97 = arith.mulf %92, %96 : vector<8x128xf32>
      %98 = vector.shape_cast %97 : vector<8x128xf32> to vector<1x8x128xf32>
      %99 = arith.truncf %98 : vector<1x8x128xf32> to vector<1x8x128xbf16>
      %100 = arith.index_cast %arg18 : i32 to index
      %c0_50 = arith.constant 0 : index
      %c0_51 = arith.constant 0 : index
      %c0_52 = arith.constant 0 : index
      %101 = vector.load %arg16[%100, %c0_50, %c0_51, %c0_52] : memref<2x1x8x128xbf16, #tpu.memory_space<vmem>>, vector<1x1x8x128xbf16>
      %102 = vector.shape_cast %101 : vector<1x1x8x128xbf16> to vector<1x8x128xbf16>
      %103 = vector.shape_cast %99 : vector<1x8x128xbf16> to vector<1x1x8x128xbf16>
      tpu.vector_store %arg16[%100, %c0_50, %c0_51, %c0_52], %103 {strides = array<i32>} : memref<2x1x8x128xbf16, #tpu.memory_space<vmem>>, vector<1x1x8x128xbf16>,
      %104 = arith.truncf %97 : vector<8x128xf32> to vector<8x128xbf16>
      %cst_53 = arith.constant dense<0.000000e+00> : vector<8x128xf32>
      %105 = tpu.matmul %104, %3, %cst_53 {dimension_numbers = #tpu.dot_dimension_numbers<[1], [0], [0], [1], [0, 0, 1, 1], [], []>} : vector<8x128xbf16>, vector<128x128xbf16>, vector<8x128xf32> -> vector<8x128xf32>
      %106 = arith.index_cast %arg18 : i32 to index
      %c0_54 = arith.constant 0 : index
      %c0_55 = arith.constant 0 : index
      %107 = vector.load %arg11[%106, %c0_54, %c0_55] : memref<2x128x128xbf16, #tpu.memory_space<vmem>>, vector<1x128x128xbf16>
      %108 = vector.shape_cast %107 : vector<1x128x128xbf16> to vector<128x128xbf16>
      %109 = arith.truncf %105 : vector<8x128xf32> to vector<8x128xbf16>
      %cst_56 = arith.constant dense<0.000000e+00> : vector<8x128xf32>
      %110 = tpu.matmul %109, %108, %cst_56 {dimension_numbers = #tpu.dot_dimension_numbers<[1], [0], [0], [1], [0, 0, 1, 1], [], []>} : vector<8x128xbf16>, vector<128x128xbf16>, vector<8x128xf32> -> vector<8x128xf32>
      %111 = arith.index_cast %arg18 : i32 to index
      %c0_57 = arith.constant 0 : index
      %c0_58 = arith.constant 0 : index
      %112 = vector.load %arg12[%111, %c0_57, %c0_58] : memref<2x1x128xf32, #tpu.memory_space<vmem>>, vector<1x1x128xf32>
      %113 = vector.shape_cast %112 : vector<1x1x128xf32> to vector<1x128xf32>
      %114 = vector.broadcast %113 : vector<1x128xf32> to vector<8x128xf32>
      %115 = arith.addf %110, %114 : vector<8x128xf32>
      %116 = arith.addf %115, %73 : vector<8x128xf32>
      %cst_59 = arith.constant 0.707106769 : f32
      %117 = vector.broadcast %cst_59 : f32 to vector<8x128xf32>
      %118 = arith.mulf %116, %117 : vector<8x128xf32>
      %119 = arith.addf %118, %arg19 : vector<8x128xf32>
      %cst_60 = arith.constant 0.707106769 : f32
      %120 = vector.broadcast %cst_60 : f32 to vector<8x128xf32>
      %121 = arith.mulf %119, %120 : vector<8x128xf32>
      scf.yield %121 : vector<8x128xf32>
    }
    %c2_i32_16 = arith.constant 2 : i32
    %c0_17 = arith.constant 0 : index
    %c0_18 = arith.constant 0 : index
    %c0_19 = arith.constant 0 : index
    %21 = vector.load %arg17[%c0_17, %c0_18, %c0_19] : memref<1x8x128xf32, #tpu.memory_space<vmem>>, vector<1x8x128xf32>
    %22 = vector.shape_cast %21 : vector<1x8x128xf32> to vector<8x128xf32>
    %23 = vector.shape_cast %20 : vector<8x128xf32> to vector<1x8x128xf32>
    tpu.vector_store %arg17[%c0_17, %c0_18, %c0_19], %23 {strides = array<i32>} : memref<1x8x128xf32, #tpu.memory_space<vmem>>, vector<1x8x128xf32>,
    %c0_20 = arith.constant 0 : index
    %c0_21 = arith.constant 0 : index
    %24 = vector.load %arg13[%c0_20, %c0_21] : memref<128x128xbf16, #tpu.memory_space<vmem>>, vector<128x128xbf16>
    %25 = arith.truncf %20 : vector<8x128xf32> to vector<8x128xbf16>
    %cst_22 = arith.constant dense<0.000000e+00> : vector<8x128xf32>
    %26 = tpu.matmul %25, %24, %cst_22 {dimension_numbers = #tpu.dot_dimension_numbers<[1], [0], [0], [1], [0, 0, 1, 1], [], []>} : vector<8x128xbf16>, vector<128x128xbf16>, vector<8x128xf32> -> vector<8x128xf32>
    %c0_23 = arith.constant 0 : index
    %c0_24 = arith.constant 0 : index
    %27 = vector.load %arg14[%c0_23, %c0_24] : memref<1x128xf32, #tpu.memory_space<vmem>>, vector<1x128xf32>
    %28 = vector.broadcast %27 : vector<1x128xf32> to vector<8x128xf32>
    %29 = arith.addf %26, %28 : vector<8x128xf32>
    %30 = arith.negf %29 : vector<8x128xf32>
    %31 = math.exp %30 : vector<8x128xf32>
    %cst_25 = arith.constant 1.000000e+00 : f32
    %32 = vector.broadcast %cst_25 : f32 to vector<8x128xf32>
    %33 = arith.addf %32, %31 : vector<8x128xf32>
    %34 = arith.divf %32, %33 : vector<8x128xf32>
    %c0_26 = arith.constant 0 : index
    %c0_27 = arith.constant 0 : index
    %c0_28 = arith.constant 0 : index
    %35 = vector.load %arg15[%c0_26, %c0_27, %c0_28] : memref<1x8x128xf32, #tpu.memory_space<vmem>>, vector<1x8x128xf32>
    %36 = vector.shape_cast %35 : vector<1x8x128xf32> to vector<8x128xf32>
    %37 = vector.shape_cast %34 : vector<8x128xf32> to vector<1x8x128xf32>
    tpu.vector_store %arg15[%c0_26, %c0_27, %c0_28], %37 {strides = array<i32>} : memref<1x8x128xf32, #tpu.memory_space<vmem>>, vector<1x8x128xf32>,
    return
  }
  func.func @transform_0(%arg0: i32) -> (i32, i32, i32) {
    %c0_i32 = arith.constant 0 : i32
    %c0_i32_0 = arith.constant 0 : i32
    %c0_i32_1 = arith.constant 0 : i32
    return %arg0, %c0_i32, %c0_i32_0 : i32, i32, i32
  }
  func.func @transform_1(%arg0: i32) -> (i32, i32, i32) {
    %c0_i32 = arith.constant 0 : i32
    %c0_i32_0 = arith.constant 0 : i32
    %c0_i32_1 = arith.constant 0 : i32
    return %arg0, %c0_i32, %c0_i32_0 : i32, i32, i32
  }
  func.func @transform_2(%arg0: i32) -> (i32, i32, i32) {
    %c0_i32 = arith.constant 0 : i32
    %c0_i32_0 = arith.constant 0 : i32
    %c0_i32_1 = arith.constant 0 : i32
    return %arg0, %c0_i32, %c0_i32_0 : i32, i32, i32
  }
  func.func @transform_3(%arg0: i32) -> (i32, i32, i32) {
    %c0_i32 = arith.constant 0 : i32
    %c0_i32_0 = arith.constant 0 : i32
    %c0_i32_1 = arith.constant 0 : i32
    return %arg0, %c0_i32, %c0_i32_0 : i32, i32, i32
  }
  func.func @transform_4(%arg0: i32) -> (i32, i32) {
    %c0_i32 = arith.constant 0 : i32
    %c0_i32_0 = arith.constant 0 : i32
    %c0_i32_1 = arith.constant 0 : i32
    return %c0_i32, %c0_i32_0 : i32, i32
  }
  func.func @transform_5(%arg0: i32) -> (i32, i32) {
    %c0_i32 = arith.constant 0 : i32
    %c0_i32_0 = arith.constant 0 : i32
    %c0_i32_1 = arith.constant 0 : i32
    return %c0_i32, %c0_i32_0 : i32, i32
  }
  func.func @transform_6(%arg0: i32) -> (i32, i32, i32) {
    %c0_i32 = arith.constant 0 : i32
    %c0_i32_0 = arith.constant 0 : i32
    %c0_i32_1 = arith.constant 0 : i32
    %c0_i32_2 = arith.constant 0 : i32
    return %c0_i32, %c0_i32_0, %c0_i32_1 : i32, i32, i32
  }
  func.func @transform_7(%arg0: i32) -> (i32, i32, i32) {
    %c0_i32 = arith.constant 0 : i32
    %c0_i32_0 = arith.constant 0 : i32
    %c0_i32_1 = arith.constant 0 : i32
    %c0_i32_2 = arith.constant 0 : i32
    return %c0_i32, %c0_i32_0, %c0_i32_1 : i32, i32, i32
  }
  func.func @transform_8(%arg0: i32) -> (i32, i32, i32) {
    %c0_i32 = arith.constant 0 : i32
    %c0_i32_0 = arith.constant 0 : i32
    %c0_i32_1 = arith.constant 0 : i32
    %c0_i32_2 = arith.constant 0 : i32
    return %c0_i32, %c0_i32_0, %c0_i32_1 : i32, i32, i32
  }
  func.func @transform_9(%arg0: i32) -> (i32, i32, i32) {
    %c0_i32 = arith.constant 0 : i32
    %c0_i32_0 = arith.constant 0 : i32
    %c0_i32_1 = arith.constant 0 : i32
    %c0_i32_2 = arith.constant 0 : i32
    return %c0_i32, %c0_i32_0, %c0_i32_1 : i32, i32, i32
  }
  func.func @transform_10(%arg0: i32) -> (i32, i32, i32) {
    %c0_i32 = arith.constant 0 : i32
    %c0_i32_0 = arith.constant 0 : i32
    %c0_i32_1 = arith.constant 0 : i32
    %c0_i32_2 = arith.constant 0 : i32
    return %c0_i32, %c0_i32_0, %c0_i32_1 : i32, i32, i32
  }
  func.func @transform_11(%arg0: i32) -> (i32, i32, i32) {
    %c0_i32 = arith.constant 0 : i32
    %c0_i32_0 = arith.constant 0 : i32
    %c0_i32_1 = arith.constant 0 : i32
    %c0_i32_2 = arith.constant 0 : i32
    return %c0_i32, %c0_i32_0, %c0_i32_1 : i32, i32, i32
  }
  func.func @transform_12(%arg0: i32) -> (i32, i32) {
    %c0_i32 = arith.constant 0 : i32
    %c0_i32_0 = arith.constant 0 : i32
    %c0_i32_1 = arith.constant 0 : i32
    return %c0_i32, %c0_i32_0 : i32, i32
  }
  func.func @transform_13(%arg0: i32) -> (i32, i32) {
    %c0_i32 = arith.constant 0 : i32
    %c0_i32_0 = arith.constant 0 : i32
    %c0_i32_1 = arith.constant 0 : i32
    return %c0_i32, %c0_i32_0 : i32, i32
  }
  func.func @transform_14(%arg0: i32) -> (i32, i32, i32) {
    %c0_i32 = arith.constant 0 : i32
    %c0_i32_0 = arith.constant 0 : i32
    %c0_i32_1 = arith.constant 0 : i32
    return %arg0, %c0_i32, %c0_i32_0 : i32, i32, i32
  }
  func.func @transform_15(%arg0: i32) -> (i32, i32, i32, i32) {
    %c0_i32 = arith.constant 0 : i32
    %c0_i32_0 = arith.constant 0 : i32
    %c0_i32_1 = arith.constant 0 : i32
    %c0_i32_2 = arith.constant 0 : i32
    return %c0_i32, %arg0, %c0_i32_0, %c0_i32_1 : i32, i32, i32, i32
  }
  func.func @transform_16(%arg0: i32) -> (i32, i32, i32) {
    %c0_i32 = arith.constant 0 : i32
    %c0_i32_0 = arith.constant 0 : i32
    %c0_i32_1 = arith.constant 0 : i32
    return %arg0, %c0_i32, %c0_i32_0 : i32, i32, i32
  }
}

</mosaic_0001>

<llo_original>
// kernel: tpu_custom_call.1
$region0: #{tpu_custom_call.1}
  #allocation0 [shape = 'u32[]', space=smem, size = 0x4, offset = 0x4, fixed_abs, tag = 'smem constant byte address 0x4 - core index']
  #allocation1 [shape = 'u32[72,128]{1,0:T(1,128)}', space=vmem, size = 0x9000, scoped, tag = 'internal scratch']
  %s0 = inlined_call_operand.hbm [shape: bf16[2,8,128], index: 0, kind: input, shape index: {}]
  %s1 = inlined_call_operand.hbm [shape: bf16[2,128,128], index: 1, kind: input, shape index: {}]
  %s2 = inlined_call_operand.hbm [shape: bf16[2,128,128], index: 2, kind: input, shape index: {}]
  %s3 = inlined_call_operand.hbm [shape: f32[2,8,128], index: 3, kind: input, shape index: {}]
  %s4 = inlined_call_operand.hbm [shape: bf16[128,128], index: 4, kind: input, shape index: {}]
  %s5 = inlined_call_operand.hbm [shape: f32[1,128], index: 5, kind: input, shape index: {}]
  %s6 = inlined_call_operand.hbm [shape: bf16[2,384,256], index: 6, kind: input, shape index: {}]
  %s7 = inlined_call_operand.vmem [shape: f32[2,1,256], index: 7, kind: input, shape index: {}]
  %s8 = inlined_call_operand.hbm [shape: bf16[2,128,128], index: 8, kind: input, shape index: {}]
  %s9 = inlined_call_operand.vmem [shape: f32[2,1,128], index: 9, kind: input, shape index: {}]
  %s10 = inlined_call_operand.hbm [shape: bf16[2,128,128], index: 10, kind: input, shape index: {}]
  %s11 = inlined_call_operand.vmem [shape: f32[2,1,128], index: 11, kind: input, shape index: {}]
  %s12 = inlined_call_operand.hbm [shape: bf16[128,128], index: 12, kind: input, shape index: {}]
  %s13 = inlined_call_operand.vmem [shape: f32[1,128], index: 13, kind: input, shape index: {}]
  %s14 = inlined_call_operand.hbm [shape: f32[2,8,128], index: 14, kind: output, shape index: {0}]
  %s15 = inlined_call_operand.hbm [shape: bf16[2,2,8,128], index: 15, kind: output, shape index: {1}]
  %s16 = inlined_call_operand.hbm [shape: f32[2,8,128], index: 16, kind: output, shape index: {2}]
  %17 = xla_tuple %s14, %s15, %s16
  %s18 = sld [smem:[#allocation0]]
  $region152: #{tpu_custom_call.1} parent=0
    _
  %s20 = ssub.s32 1, %s18
  %s21 = scalar_select 0, %s20, %s18
  $region1: #{tpu_custom_call.1} parent=0
    #allocation2 [shape = 'u8[4096]{0}', space=vmem, size = 0x1000, scoped, tag = 'input window, operand 0']
    #allocation3 [shape = 's32[2]{0}', space=sflag, size = 0x8, scoped, tag = 'scoped memory for tpu_custom_call.1']
    #allocation4 [shape = 's32[2]{0}', space=sflag, size = 0x8, scoped, tag = 'scoped memory for tpu_custom_call.1']
    #allocation5 [shape = 'u8[65536]{0}', space=vmem, size = 0x10000, scoped, tag = 'input window, operand 1']
    #allocation6 [shape = 's32[2]{0}', space=sflag, size = 0x8, scoped, tag = 'scoped memory for tpu_custom_call.1']
    #allocation7 [shape = 'u8[65536]{0}', space=vmem, size = 0x10000, scoped, tag = 'input window, operand 2']
    #allocation8 [shape = 'u8[8192]{0}', space=vmem, size = 0x2000, scoped, tag = 'input window, operand 3']
    #allocation9 [shape = 's32[2]{0}', space=sflag, size = 0x8, scoped, tag = 'scoped memory for tpu_custom_call.1']
    #allocation10 [shape = 'u8[32768]{0}', space=vmem, size = 0x8000, scoped, tag = 'input window, operand 4, single buffered']
    #allocation11 [shape = 'u8[512]{0}', space=vmem, size = 0x400, scoped, tag = 'input window, operand 5, single buffered']
    #allocation12 [shape = 's32[1]{0}', space=sflag, size = 0x4, scoped, tag = 'scoped memory for tpu_custom_call.1']
    #allocation13 [shape = 'u8[393216]{0}', space=vmem, size = 0x60000, scoped, tag = 'input window, operand 6, single buffered']
    #allocation14 [shape = 'u8[65536]{0}', space=vmem, size = 0x10000, scoped, tag = 'input window, operand 8, single buffered']
    #allocation15 [shape = 's32[1]{0}', space=sflag, size = 0x4, scoped, tag = 'scoped memory for tpu_custom_call.1']
    #allocation16 [shape = 'u8[65536]{0}', space=vmem, size = 0x10000, scoped, tag = 'input window, operand 10, single buffered']
    #allocation17 [shape = 'u8[32768]{0}', space=vmem, size = 0x8000, scoped, tag = 'input window, operand 12, single buffered']
    #allocation18 [shape = 's32[1]{0}', space=sflag, size = 0x4, scoped, tag = 'scoped memory for tpu_custom_call.1']
    #allocation19 [shape = 'u8[8192]{0}', space=vmem, size = 0x2000, scoped, tag = 'output window, operand 0']
    #allocation20 [shape = 'u8[8192]{0}', space=vmem, size = 0x2000, scoped, tag = 'output window, operand 1']
    #allocation21 [shape = 's32[2]{0}', space=sflag, size = 0x8, scoped, tag = 'scoped memory for tpu_custom_call.1']
    #allocation22 [shape = 'u8[8192]{0}', space=vmem, size = 0x2000, scoped, tag = 'output window, operand 2']
    %22 = vsyncpa [#allocation3], 0
    %s23 = scalar_lea.sflag [#allocation3], 1
    %24 = vsyncpa %s23, 0
    %25 = vsyncpa [#allocation6], 0
    %s26 = scalar_lea.sflag [#allocation6], 1
    %27 = vsyncpa %s26, 0
    %28 = vsyncpa [#allocation9], 0
    %s29 = scalar_lea.sflag [#allocation9], 1
    %30 = vsyncpa %s29, 0
    %31 = vsyncpa [#allocation12], 0
    %32 = vsyncpa [#allocation15], 0
    %33 = vsyncpa [#allocation18], 0
    %34 = vsyncpa [#allocation4], 0
    %s35 = scalar_lea.sflag [#allocation4], 1
    %36 = vsyncpa %s35, 0
    %37 = vsyncpa [#allocation21], 0
    %s38 = scalar_lea.sflag [#allocation21], 1
    %39 = vsyncpa %s38, 0
    loop: start=0, step=1, limit=4
    $region2: #{tpu_custom_call.1} parent=1 // loop_pre_header
      _
    $region3: #{tpu_custom_call.1} parent=1 // loop_header
      %s41 = sphi 0, %s45
      %p42 = scmp.ge.s32.totalorder %s41, 4
      %s51 = sphi 0, %s53
      %s54 = sphi 0, %s51
      %s55 = sphi 0, %s54
      %s71 = sphi 0, %s55
      %s77 = sphi 0, %s79
      %s80 = sphi 0, %s77
      %s81 = sphi 0, %s80
      %s97 = sphi 0, %s81
      %s103 = sphi 0, %s105
      %s106 = sphi 0, %s103
      %s107 = sphi 0, %s106
      %s123 = sphi 0, %s107
      %s129 = sphi 0, %s131
      %s132 = sphi 0, %s129
      %s133 = sphi 0, %s132
      %s149 = sphi 0, %s133
      %s153 = sphi 0, %s153
      %s155 = sphi 0, %s153
      %s156 = sphi 0, %s155
      %s170 = sphi 0, %s156
      %s174 = sphi 0, %s174
      %s176 = sphi 0, %s174
      %s177 = sphi 0, %s176
      %s191 = sphi 0, %s177
      %s195 = sphi 0, %s195
      %s197 = sphi 0, %s195
      %s198 = sphi 0, %s197
      %s212 = sphi 0, %s198
      %s216 = sphi 0, %s216
      %s218 = sphi 0, %s216
      %s219 = sphi 0, %s218
      %s233 = sphi 0, %s219
      %s237 = sphi 0, %s237
      %s239 = sphi 0, %s237
      %s240 = sphi 0, %s239
      %s254 = sphi 0, %s240
      %s258 = sphi 0, %s258
      %s260 = sphi 0, %s258
      %s261 = sphi 0, %s260
      %s275 = sphi 0, %s261
      %s279 = sphi 0, %s279
      %s281 = sphi 0, %s279
      %s282 = sphi 0, %s281
      %s296 = sphi 0, %s282
      %s300 = sphi 0, %s300
      %s302 = sphi 0, %s300
      %s303 = sphi 0, %s302
      %s317 = sphi 0, %s303
      %s321 = sphi 0, %s321
      %s323 = sphi 0, %s321
      %s324 = sphi 0, %s323
      %s338 = sphi 0, %s324
      %s342 = sphi 0, %s342
      %s344 = sphi 0, %s342
      %s345 = sphi 0, %s344
      %s359 = sphi 0, %s345
      %s365 = sphi 0, %s367
      %s368 = sphi 0, %s365
      %s369 = sphi 0, %s368
      %s385 = sphi 0, %s369
      %s391 = sphi 0, %s393
      %s394 = sphi 0, %s391
      %s395 = sphi 0, %s394
      %s411 = sphi 0, %s395
      %s417 = sphi 0, %s419
      %s420 = sphi 0, %s417
      %s421 = sphi 0, %s420
      %s437 = sphi 0, %s421
    $region4: #{tpu_custom_call.1} parent=1 // loop_header_branch
      %44 = sbr.rel (%p42) target = $region8
    $region5: #{tpu_custom_call.1} parent=1 // loop_body
      %s46 = ssub.s32 %s41, 1
      %s47 = ssub.s32 %s41, 2
      %s48 = sadd.s32 %s41, 1
      %s49 = ssub.s32 %s41, %s48
      %p50 = scmp.eq.s32.totalorder %s49, 0
      %s52 = sadd.s32 %s51, 1
      %s53 = scalar_select %p50, %s51, %s52
      %p56 = pneg %p50
      %p57 = scmp.eq.s32.totalorder %s41, 1
      %p58 = por %p56, %p57
      %p59 = scmp.ne.s32.totalorder %s51, %s54
      %p60 = scmp.eq.s32.totalorder %s41, 0
      %p61 = por %p59, %p60
      %p62 = scmp.ne.s32.totalorder %s51, %s54
      %p63 = scmp.eq.s32.totalorder %s46, 1
      %p64 = por %p62, %p63
      %p65 = scmp.ne.s32.totalorder %s54, %s55
      %p66 = scmp.eq.s32.totalorder %s46, 0
      %p67 = por %p65, %p66
      %p68 = scmp.ne.s32.totalorder %s54, %s55
      %p69 = scmp.eq.s32.totalorder %s47, 1
      %p70 = por %p68, %p69
      %p72 = scmp.ne.s32.totalorder %s55, %s71
      %p73 = scmp.eq.s32.totalorder %s47, 0
      %p74 = por %p72, %p73
      %s75 = ssub.s32 %s41, %s48
      %p76 = scmp.eq.s32.totalorder %s75, 0
      %s78 = sadd.s32 %s77, 1
      %s79 = scalar_select %p76, %s77, %s78
      %p82 = pneg %p76
      %p83 = scmp.eq.s32.totalorder %s41, 1
      %p84 = por %p82, %p83
      %p85 = scmp.ne.s32.totalorder %s77, %s80
      %p86 = scmp.eq.s32.totalorder %s41, 0
      %p87 = por %p85, %p86
      %p88 = scmp.ne.s32.totalorder %s77, %s80
      %p89 = scmp.eq.s32.totalorder %s46, 1
      %p90 = por %p88, %p89
      %p91 = scmp.ne.s32.totalorder %s80, %s81
      %p92 = scmp.eq.s32.totalorder %s46, 0
      %p93 = por %p91, %p92
      %p94 = scmp.ne.s32.totalorder %s80, %s81
      %p95 = scmp.eq.s32.totalorder %s47, 1
      %p96 = por %p94, %p95
      %p98 = scmp.ne.s32.totalorder %s81, %s97
      %p99 = scmp.eq.s32.totalorder %s47, 0
      %p100 = por %p98, %p99
      %s101 = ssub.s32 %s41, %s48
      %p102 = scmp.eq.s32.totalorder %s101, 0
      %s104 = sadd.s32 %s103, 1
      %s105 = scalar_select %p102, %s103, %s104
      %p108 = pneg %p102
      %p109 = scmp.eq.s32.totalorder %s41, 1
      %p110 = por %p108, %p109
      %p111 = scmp.ne.s32.totalorder %s103, %s106
      %p112 = scmp.eq.s32.totalorder %s41, 0
      %p113 = por %p111, %p112
      %p114 = scmp.ne.s32.totalorder %s103, %s106
      %p115 = scmp.eq.s32.totalorder %s46, 1
      %p116 = por %p114, %p115
      %p117 = scmp.ne.s32.totalorder %s106, %s107
      %p118 = scmp.eq.s32.totalorder %s46, 0
      %p119 = por %p117, %p118
      %p120 = scmp.ne.s32.totalorder %s106, %s107
      %p121 = scmp.eq.s32.totalorder %s47, 1
      %p122 = por %p120, %p121
      %p124 = scmp.ne.s32.totalorder %s107, %s123
      %p125 = scmp.eq.s32.totalorder %s47, 0
      %p126 = por %p124, %p125
      %s127 = ssub.s32 %s41, %s48
      %p128 = scmp.eq.s32.totalorder %s127, 0
      %s130 = sadd.s32 %s129, 1
      %s131 = scalar_select %p128, %s129, %s130
      %p134 = pneg %p128
      %p135 = scmp.eq.s32.totalorder %s41, 1
      %p136 = por %p134, %p135
      %p137 = scmp.ne.s32.totalorder %s129, %s132
      %p138 = scmp.eq.s32.totalorder %s41, 0
      %p139 = por %p137, %p138
      %p140 = scmp.ne.s32.totalorder %s129, %s132
      %p141 = scmp.eq.s32.totalorder %s46, 1
      %p142 = por %p140, %p141
      %p143 = scmp.ne.s32.totalorder %s132, %s133
      %p144 = scmp.eq.s32.totalorder %s46, 0
      %p145 = por %p143, %p144
      %p146 = scmp.ne.s32.totalorder %s132, %s133
      %p147 = scmp.eq.s32.totalorder %s47, 1
      %p148 = por %p146, %p147
      %p150 = scmp.ne.s32.totalorder %s133, %s149
      %p151 = scmp.eq.s32.totalorder %s47, 0
      %p152 = por %p150, %p151
      %s154 = sadd.s32 %s153, 1
      %p157 = scmp.eq.s32.totalorder %s41, 1
      %p158 = scmp.ne.s32.totalorder %s153, %s155
      %p159 = scmp.eq.s32.totalorder %s41, 0
      %p160 = por %p158, %p159
      %p161 = scmp.ne.s32.totalorder %s153, %s155
      %p162 = scmp.eq.s32.totalorder %s46, 1
      %p163 = por %p161, %p162
      %p164 = scmp.ne.s32.totalorder %s155, %s156
      %p165 = scmp.eq.s32.totalorder %s46, 0
      %p166 = por %p164, %p165
      %p167 = scmp.ne.s32.totalorder %s155, %s156
      %p168 = scmp.eq.s32.totalorder %s47, 1
      %p169 = por %p167, %p168
      %p171 = scmp.ne.s32.totalorder %s156, %s170
      %p172 = scmp.eq.s32.totalorder %s47, 0
      %p173 = por %p171, %p172
      %s175 = sadd.s32 %s174, 1
      %p178 = scmp.eq.s32.totalorder %s41, 1
      %p179 = scmp.ne.s32.totalorder %s174, %s176
      %p180 = scmp.eq.s32.totalorder %s41, 0
      %p181 = por %p179, %p180
      %p182 = scmp.ne.s32.totalorder %s174, %s176
      %p183 = scmp.eq.s32.totalorder %s46, 1
      %p184 = por %p182, %p183
      %p185 = scmp.ne.s32.totalorder %s176, %s177
      %p186 = scmp.eq.s32.totalorder %s46, 0
      %p187 = por %p185, %p186
      %p188 = scmp.ne.s32.totalorder %s176, %s177
      %p189 = scmp.eq.s32.totalorder %s47, 1
      %p190 = por %p188, %p189
      %p192 = scmp.ne.s32.totalorder %s177, %s191
      %p193 = scmp.eq.s32.totalorder %s47, 0
      %p194 = por %p192, %p193
      %s196 = sadd.s32 %s195, 1
      %p199 = scmp.eq.s32.totalorder %s41, 1
      %p200 = scmp.ne.s32.totalorder %s195, %s197
      %p201 = scmp.eq.s32.totalorder %s41, 0
      %p202 = por %p200, %p201
      %p203 = scmp.ne.s32.totalorder %s195, %s197
      %p204 = scmp.eq.s32.totalorder %s46, 1
      %p205 = por %p203, %p204
      %p206 = scmp.ne.s32.totalorder %s197, %s198
      %p207 = scmp.eq.s32.totalorder %s46, 0
      %p208 = por %p206, %p207
      %p209 = scmp.ne.s32.totalorder %s197, %s198
      %p210 = scmp.eq.s32.totalorder %s47, 1
      %p211 = por %p209, %p210
      %p213 = scmp.ne.s32.totalorder %s198, %s212
      %p214 = scmp.eq.s32.totalorder %s47, 0
      %p215 = por %p213, %p214
      %s217 = sadd.s32 %s216, 1
      %p220 = scmp.eq.s32.totalorder %s41, 1
      %p221 = scmp.ne.s32.totalorder %s216, %s218
      %p222 = scmp.eq.s32.totalorder %s41, 0
      %p223 = por %p221, %p222
      %p224 = scmp.ne.s32.totalorder %s216, %s218
      %p225 = scmp.eq.s32.totalorder %s46, 1
      %p226 = por %p224, %p225
      %p227 = scmp.ne.s32.totalorder %s218, %s219
      %p228 = scmp.eq.s32.totalorder %s46, 0
      %p229 = por %p227, %p228
      %p230 = scmp.ne.s32.totalorder %s218, %s219
      %p231 = scmp.eq.s32.totalorder %s47, 1
      %p232 = por %p230, %p231
      %p234 = scmp.ne.s32.totalorder %s219, %s233
      %p235 = scmp.eq.s32.totalorder %s47, 0
      %p236 = por %p234, %p235
      %s238 = sadd.s32 %s237, 1
      %p241 = scmp.eq.s32.totalorder %s41, 1
      %p242 = scmp.ne.s32.totalorder %s237, %s239
      %p243 = scmp.eq.s32.totalorder %s41, 0
      %p244 = por %p242, %p243
      %p245 = scmp.ne.s32.totalorder %s237, %s239
      %p246 = scmp.eq.s32.totalorder %s46, 1
      %p247 = por %p245, %p246
      %p248 = scmp.ne.s32.totalorder %s239, %s240
      %p249 = scmp.eq.s32.totalorder %s46, 0
      %p250 = por %p248, %p249
      %p251 = scmp.ne.s32.totalorder %s239, %s240
      %p252 = scmp.eq.s32.totalorder %s47, 1
      %p253 = por %p251, %p252
      %p255 = scmp.ne.s32.totalorder %s240, %s254
      %p256 = scmp.eq.s32.totalorder %s47, 0
      %p257 = por %p255, %p256
      %s259 = sadd.s32 %s258, 1
      %p262 = scmp.eq.s32.totalorder %s41, 1
      %p263 = scmp.ne.s32.totalorder %s258, %s260
      %p264 = scmp.eq.s32.totalorder %s41, 0
      %p265 = por %p263, %p264
      %p266 = scmp.ne.s32.totalorder %s258, %s260
      %p267 = scmp.eq.s32.totalorder %s46, 1
      %p268 = por %p266, %p267
      %p269 = scmp.ne.s32.totalorder %s260, %s261
      %p270 = scmp.eq.s32.totalorder %s46, 0
      %p271 = por %p269, %p270
      %p272 = scmp.ne.s32.totalorder %s260, %s261
      %p273 = scmp.eq.s32.totalorder %s47, 1
      %p274 = por %p272, %p273
      %p276 = scmp.ne.s32.totalorder %s261, %s275
      %p277 = scmp.eq.s32.totalorder %s47, 0
      %p278 = por %p276, %p277
      %s280 = sadd.s32 %s279, 1
      %p283 = scmp.eq.s32.totalorder %s41, 1
      %p284 = scmp.ne.s32.totalorder %s279, %s281
      %p285 = scmp.eq.s32.totalorder %s41, 0
      %p286 = por %p284, %p285
      %p287 = scmp.ne.s32.totalorder %s279, %s281
      %p288 = scmp.eq.s32.totalorder %s46, 1
      %p289 = por %p287, %p288
      %p290 = scmp.ne.s32.totalorder %s281, %s282
      %p291 = scmp.eq.s32.totalorder %s46, 0
      %p292 = por %p290, %p291
      %p293 = scmp.ne.s32.totalorder %s281, %s282
      %p294 = scmp.eq.s32.totalorder %s47, 1
      %p295 = por %p293, %p294
      %p297 = scmp.ne.s32.totalorder %s282, %s296
      %p298 = scmp.eq.s32.totalorder %s47, 0
      %p299 = por %p297, %p298
      %s301 = sadd.s32 %s300, 1
      %p304 = scmp.eq.s32.totalorder %s41, 1
      %p305 = scmp.ne.s32.totalorder %s300, %s302
      %p306 = scmp.eq.s32.totalorder %s41, 0
      %p307 = por %p305, %p306
      %p308 = scmp.ne.s32.totalorder %s300, %s302
      %p309 = scmp.eq.s32.totalorder %s46, 1
      %p310 = por %p308, %p309
      %p311 = scmp.ne.s32.totalorder %s302, %s303
      %p312 = scmp.eq.s32.totalorder %s46, 0
      %p313 = por %p311, %p312
      %p314 = scmp.ne.s32.totalorder %s302, %s303
      %p315 = scmp.eq.s32.totalorder %s47, 1
      %p316 = por %p314, %p315
      %p318 = scmp.ne.s32.totalorder %s303, %s317
      %p319 = scmp.eq.s32.totalorder %s47, 0
      %p320 = por %p318, %p319
      %s322 = sadd.s32 %s321, 1
      %p325 = scmp.eq.s32.totalorder %s41, 1
      %p326 = scmp.ne.s32.totalorder %s321, %s323
      %p327 = scmp.eq.s32.totalorder %s41, 0
      %p328 = por %p326, %p327
      %p329 = scmp.ne.s32.totalorder %s321, %s323
      %p330 = scmp.eq.s32.totalorder %s46, 1
      %p331 = por %p329, %p330
      %p332 = scmp.ne.s32.totalorder %s323, %s324
      %p333 = scmp.eq.s32.totalorder %s46, 0
      %p334 = por %p332, %p333
      %p335 = scmp.ne.s32.totalorder %s323, %s324
      %p336 = scmp.eq.s32.totalorder %s47, 1
      %p337 = por %p335, %p336
      %p339 = scmp.ne.s32.totalorder %s324, %s338
      %p340 = scmp.eq.s32.totalorder %s47, 0
      %p341 = por %p339, %p340
      %s343 = sadd.s32 %s342, 1
      %p346 = scmp.eq.s32.totalorder %s41, 1
      %p347 = scmp.ne.s32.totalorder %s342, %s344
      %p348 = scmp.eq.s32.totalorder %s41, 0
      %p349 = por %p347, %p348
      %p350 = scmp.ne.s32.totalorder %s342, %s344
      %p351 = scmp.eq.s32.totalorder %s46, 1
      %p352 = por %p350, %p351
      %p353 = scmp.ne.s32.totalorder %s344, %s345
      %p354 = scmp.eq.s32.totalorder %s46, 0
      %p355 = por %p353, %p354
      %p356 = scmp.ne.s32.totalorder %s344, %s345
      %p357 = scmp.eq.s32.totalorder %s47, 1
      %p358 = por %p356, %p357
      %p360 = scmp.ne.s32.totalorder %s345, %s359
      %p361 = scmp.eq.s32.totalorder %s47, 0
      %p362 = por %p360, %p361
      %s363 = ssub.s32 %s41, %s48
      %p364 = scmp.eq.s32.totalorder %s363, 0
      %s366 = sadd.s32 %s365, 1
      %s367 = scalar_select %p364, %s365, %s366
      %p370 = pneg %p364
      %p371 = scmp.eq.s32.totalorder %s41, 1
      %p372 = por %p370, %p371
      %p373 = scmp.ne.s32.totalorder %s365, %s368
      %p374 = scmp.eq.s32.totalorder %s41, 0
      %p375 = por %p373, %p374
      %p376 = scmp.ne.s32.totalorder %s365, %s368
      %p377 = scmp.eq.s32.totalorder %s46, 1
      %p378 = por %p376, %p377
      %p379 = scmp.ne.s32.totalorder %s368, %s369
      %p380 = scmp.eq.s32.totalorder %s46, 0
      %p381 = por %p379, %p380
      %p382 = scmp.ne.s32.totalorder %s368, %s369
      %p383 = scmp.eq.s32.totalorder %s47, 1
      %p384 = por %p382, %p383
      %p386 = scmp.ne.s32.totalorder %s369, %s385
      %p387 = scmp.eq.s32.totalorder %s47, 0
      %p388 = por %p386, %p387
      %s389 = ssub.s32 %s41, %s48
      %p390 = scmp.eq.s32.totalorder %s389, 0
      %s392 = sadd.s32 %s391, 1
      %s393 = scalar_select %p390, %s391, %s392
      %p396 = pneg %p390
      %p397 = scmp.eq.s32.totalorder %s41, 1
      %p398 = por %p396, %p397
      %p399 = scmp.ne.s32.totalorder %s391, %s394
      %p400 = scmp.eq.s32.totalorder %s41, 0
      %p401 = por %p399, %p400
      %p402 = scmp.ne.s32.totalorder %s391, %s394
      %p403 = scmp.eq.s32.totalorder %s46, 1
      %p404 = por %p402, %p403
      %p405 = scmp.ne.s32.totalorder %s394, %s395
      %p406 = scmp.eq.s32.totalorder %s46, 0
      %p407 = por %p405, %p406
      %p408 = scmp.ne.s32.totalorder %s394, %s395
      %p409 = scmp.eq.s32.totalorder %s47, 1
      %p410 = por %p408, %p409
      %p412 = scmp.ne.s32.totalorder %s395, %s411
      %p413 = scmp.eq.s32.totalorder %s47, 0
      %p414 = por %p412, %p413
      %s415 = ssub.s32 %s41, %s48
      %p416 = scmp.eq.s32.totalorder %s415, 0
      %s418 = sadd.s32 %s417, 1
      %s419 = scalar_select %p416, %s417, %s418
      %p422 = pneg %p416
      %p423 = scmp.eq.s32.totalorder %s41, 1
      %p424 = por %p422, %p423
      %p425 = scmp.ne.s32.totalorder %s417, %s420
      %p426 = scmp.eq.s32.totalorder %s41, 0
      %p427 = por %p425, %p426
      %p428 = scmp.ne.s32.totalorder %s417, %s420
      %p429 = scmp.eq.s32.totalorder %s46, 1
      %p430 = por %p428, %p429
      %p431 = scmp.ne.s32.totalorder %s420, %s421
      %p432 = scmp.eq.s32.totalorder %s46, 0
      %p433 = por %p431, %p432
      %p434 = scmp.ne.s32.totalorder %s420, %s421
      %p435 = scmp.eq.s32.totalorder %s47, 1
      %p436 = por %p434, %p435
      %p438 = scmp.ne.s32.totalorder %s421, %s437
      %p439 = scmp.eq.s32.totalorder %s47, 0
      %p440 = por %p438, %p439
      %p441 = scmp.le.s32.totalorder 1, %s41
      %p442 = scmp.lt.s32.totalorder %s41, 3
      %p443 = pnand %p441, %p442
      %p444 = pneg %p443
      // Predicated region
      $region9: #{tpu_custom_call.1} parent=5 // pred_check
        _
      $region10: #{tpu_custom_call.1} parent=5 // pred_check_branch
        %446 = sbr.rel (%p443) target = $region12
      $region11: #{tpu_custom_call.1} parent=5 // pred_region
        %s447 = ssub.s32 %s41, 1
        // Predicated region
        $region13: #{tpu_custom_call.1} parent=11 // pred_check
          %p448 = pneg %p166
        $region14: #{tpu_custom_call.1} parent=11 // pred_check_branch
          %450 = sbr.rel (%p448) target = $region16
        $region15: #{tpu_custom_call.1} parent=11 // pred_region
          %452 = vsyncadd [#allocation9], 0
          %s453 = sshll.u32 %s4, 4
          %s454 = int_to_ptr.hbm [resolvable:$true] %s453
          %s455 = sshll.u32 [#allocation10], 4
          %s456 = int_to_ptr.vmem [resolvable:$true] %s455
          %461 = dma.hbm_to_vmem [thread:$0]  %s454, 1024, %s456, [#allocation9], 64, 64, 4
        $region16: #{tpu_custom_call.1} parent=11 // pred_fallthru
          _
        // Predicated region
        $region17: #{tpu_custom_call.1} parent=11 // pred_check
          %p462 = pneg %p187
        $region18: #{tpu_custom_call.1} parent=11 // pred_check_branch
          %464 = sbr.rel (%p462) target = $region20
        $region19: #{tpu_custom_call.1} parent=11 // pred_region
          %466 = vsyncadd [#allocation12], 0
          %s468 = sshll.u32 %s5, 4
          %s469 = int_to_ptr.hbm [resolvable:$true] %s468
          %s470 = sshll.u32 [#allocation11], 4
          %s471 = int_to_ptr.vmem [resolvable:$true] %s470
          %473 = dma.hbm_to_vmem [thread:$0]  %s469, 16, %s471, [#allocation12]
        $region20: #{tpu_custom_call.1} parent=11 // pred_fallthru
          _
        // Predicated region
        $region21: #{tpu_custom_call.1} parent=11 // pred_check
          %p474 = pneg %p208
        $region22: #{tpu_custom_call.1} parent=11 // pred_check_branch
          %476 = sbr.rel (%p474) target = $region24
        $region23: #{tpu_custom_call.1} parent=11 // pred_region
          %478 = vsyncadd [#allocation12], 0
          %s479 = sshll.u32 %s6, 4
          %s480 = int_to_ptr.hbm [resolvable:$true] %s479
          %s481 = sshll.u32 [#allocation13], 4
          %s482 = int_to_ptr.vmem [resolvable:$true] %s481
          %487 = dma.hbm_to_vmem [thread:$0]  %s480, 12288, %s482, [#allocation12], 128, 128, 8
        $region24: #{tpu_custom_call.1} parent=11 // pred_fallthru
          _
        // Predicated region
        $region25: #{tpu_custom_call.1} parent=11 // pred_check
          %p488 = pneg %p229
        $region26: #{tpu_custom_call.1} parent=11 // pred_check_branch
          %490 = sbr.rel (%p488) target = $region28
        $region27: #{tpu_custom_call.1} parent=11 // pred_region
          _
        $region28: #{tpu_custom_call.1} parent=11 // pred_fallthru
          _
        // Predicated region
        $region29: #{tpu_custom_call.1} parent=11 // pred_check
          %p491 = pneg %p250
        $region30: #{tpu_custom_call.1} parent=11 // pred_check_branch
          %493 = sbr.rel (%p491) target = $region32
        $region31: #{tpu_custom_call.1} parent=11 // pred_region
          %495 = vsyncadd [#allocation15], 0
          %s496 = sshll.u32 %s8, 4
          %s497 = int_to_ptr.hbm [resolvable:$true] %s496
          %s498 = sshll.u32 [#allocation14], 4
          %s499 = int_to_ptr.vmem [resolvable:$true] %s498
          %504 = dma.hbm_to_vmem [thread:$0]  %s497, 2048, %s499, [#allocation15], 64, 64, 4
        $region32: #{tpu_custom_call.1} parent=11 // pred_fallthru
          _
        // Predicated region
        $region33: #{tpu_custom_call.1} parent=11 // pred_check
          %p505 = pneg %p271
        $region34: #{tpu_custom_call.1} parent=11 // pred_check_branch
          %507 = sbr.rel (%p505) target = $region36
        $region35: #{tpu_custom_call.1} parent=11 // pred_region
          _
        $region36: #{tpu_custom_call.1} parent=11 // pred_fallthru
          _
        // Predicated region
        $region37: #{tpu_custom_call.1} parent=11 // pred_check
          %p508 = pneg %p292
        $region38: #{tpu_custom_call.1} parent=11 // pred_check_branch
          %510 = sbr.rel (%p508) target = $region40
        $region39: #{tpu_custom_call.1} parent=11 // pred_region
          %512 = vsyncadd [#allocation15], 0
          %s513 = sshll.u32 %s10, 4
          %s514 = int_to_ptr.hbm [resolvable:$true] %s513
          %s515 = sshll.u32 [#allocation16], 4
          %s516 = int_to_ptr.vmem [resolvable:$true] %s515
          %521 = dma.hbm_to_vmem [thread:$0]  %s514, 2048, %s516, [#allocation15], 64, 64, 4
        $region40: #{tpu_custom_call.1} parent=11 // pred_fallthru
          _
        // Predicated region
        $region41: #{tpu_custom_call.1} parent=11 // pred_check
          %p522 = pneg %p313
        $region42: #{tpu_custom_call.1} parent=11 // pred_check_branch
          %524 = sbr.rel (%p522) target = $region44
        $region43: #{tpu_custom_call.1} parent=11 // pred_region
          _
        $region44: #{tpu_custom_call.1} parent=11 // pred_fallthru
          _
        // Predicated region
        $region45: #{tpu_custom_call.1} parent=11 // pred_check
          %p525 = pneg %p334
        $region46: #{tpu_custom_call.1} parent=11 // pred_check_branch
          %527 = sbr.rel (%p525) target = $region48
        $region47: #{tpu_custom_call.1} parent=11 // pred_region
          %529 = vsyncadd [#allocation18], 0
          %s530 = sshll.u32 %s12, 4
          %s531 = int_to_ptr.hbm [resolvable:$true] %s530
          %s532 = sshll.u32 [#allocation17], 4
          %s533 = int_to_ptr.vmem [resolvable:$true] %s532
          %538 = dma.hbm_to_vmem [thread:$0]  %s531, 1024, %s533, [#allocation18], 64, 64, 4
        $region48: #{tpu_custom_call.1} parent=11 // pred_fallthru
          _
        // Predicated region
        $region49: #{tpu_custom_call.1} parent=11 // pred_check
          %p539 = pneg %p355
        $region50: #{tpu_custom_call.1} parent=11 // pred_check_branch
          %541 = sbr.rel (%p539) target = $region52
        $region51: #{tpu_custom_call.1} parent=11 // pred_region
          _
        $region52: #{tpu_custom_call.1} parent=11 // pred_fallthru
          _
      $region12: #{tpu_custom_call.1} parent=5 // pred_fallthru
        _
      %p542 = scmp.lt.s32.totalorder %s41, 2
      // Predicated region
      $region53: #{tpu_custom_call.1} parent=5 // pred_check
        %p543 = pneg %p542
      $region54: #{tpu_custom_call.1} parent=5 // pred_check_branch
        %545 = sbr.rel (%p543) target = $region56
      $region55: #{tpu_custom_call.1} parent=5 // pred_region
        // Predicated region
        $region57: #{tpu_custom_call.1} parent=55 // pred_check
          %p546 = pneg %p61
        $region58: #{tpu_custom_call.1} parent=55 // pred_check_branch
          %548 = sbr.rel (%p546) target = $region60
        $region59: #{tpu_custom_call.1} parent=55 // pred_region
          %s549 = sand.u32 %s51, 1
          %s550 = scalar_lea.sflag [#allocation3], %s549
          %s551 = sand.u32 %s51, 1
          %s552 = smul.addr %s551, 4
          %s553 = scalar_lea.vmem [#allocation2], %s552
          %555 = vsyncadd %s550, 0
          %s556 = smul.addr %s41, 4
          %s557 = scalar_lea.hbm %s0, %s556
          %s559 = sshll.u32 %s557, 4
          %s560 = int_to_ptr.hbm [resolvable:$true] %s559
          %s561 = sshll.u32 %s553, 4
          %s562 = int_to_ptr.vmem [resolvable:$true] %s561
          %564 = dma.hbm_to_vmem [thread:$0]  %s560, 64, %s562, %s550
        $region60: #{tpu_custom_call.1} parent=55 // pred_fallthru
          _
        // Predicated region
        $region61: #{tpu_custom_call.1} parent=55 // pred_check
          %p565 = pneg %p87
        $region62: #{tpu_custom_call.1} parent=55 // pred_check_branch
          %567 = sbr.rel (%p565) target = $region64
        $region63: #{tpu_custom_call.1} parent=55 // pred_region
          %s568 = sand.u32 %s41, 1
          %s569 = scalar_lea.sflag [#allocation6], %s568
          %s570 = sand.u32 %s77, 1
          %s571 = smul.addr %s570, 64
          %s572 = scalar_lea.vmem [#allocation5], %s571
          %574 = vsyncadd %s569, 0
          %s575 = smul.addr %s41, 16
          %s576 = smul.addr %s575, 4
          %s577 = scalar_lea.hbm %s1, %s576
          %s578 = sshll.u32 %s577, 4
          %s579 = int_to_ptr.hbm [resolvable:$true] %s578
          %s580 = sshll.u32 %s572, 4
          %s581 = int_to_ptr.vmem [resolvable:$true] %s580
          %586 = dma.hbm_to_vmem [thread:$0]  %s579, 1024, %s581, %s569, 64, 64, 4
        $region64: #{tpu_custom_call.1} parent=55 // pred_fallthru
          _
        // Predicated region
        $region65: #{tpu_custom_call.1} parent=55 // pred_check
          %p587 = pneg %p113
        $region66: #{tpu_custom_call.1} parent=55 // pred_check_branch
          %589 = sbr.rel (%p587) target = $region68
        $region67: #{tpu_custom_call.1} parent=55 // pred_region
          %s590 = sand.u32 %s41, 1
          %s591 = scalar_lea.sflag [#allocation6], %s590
          %s592 = sand.u32 %s103, 1
          %s593 = smul.addr %s592, 64
          %s594 = scalar_lea.vmem [#allocation7], %s593
          %596 = vsyncadd %s591, 0
          %s597 = smul.addr %s41, 16
          %s598 = smul.addr %s597, 4
          %s599 = scalar_lea.hbm %s2, %s598
          %s600 = sshll.u32 %s599, 4
          %s601 = int_to_ptr.hbm [resolvable:$true] %s600
          %s602 = sshll.u32 %s594, 4
          %s603 = int_to_ptr.vmem [resolvable:$true] %s602
          %608 = dma.hbm_to_vmem [thread:$0]  %s601, 1024, %s603, %s591, 64, 64, 4
        $region68: #{tpu_custom_call.1} parent=55 // pred_fallthru
          _
        // Predicated region
        $region69: #{tpu_custom_call.1} parent=55 // pred_check
          %p609 = pneg %p139
        $region70: #{tpu_custom_call.1} parent=55 // pred_check_branch
          %611 = sbr.rel (%p609) target = $region72
        $region71: #{tpu_custom_call.1} parent=55 // pred_region
          %s612 = sand.u32 %s41, 1
          %s613 = scalar_lea.sflag [#allocation9], %s612
          %s614 = sand.u32 %s129, 1
          %s615 = smul.addr %s614, 8
          %s616 = scalar_lea.vmem [#allocation8], %s615
          %618 = vsyncadd %s613, 0
          %s619 = smul.addr %s41, 8
          %s620 = scalar_lea.hbm %s3, %s619
          %s622 = sshll.u32 %s620, 4
          %s623 = int_to_ptr.hbm [resolvable:$true] %s622
          %s624 = sshll.u32 %s616, 4
          %s625 = int_to_ptr.vmem [resolvable:$true] %s624
          %627 = dma.hbm_to_vmem [thread:$0]  %s623, 128, %s625, %s613
        $region72: #{tpu_custom_call.1} parent=55 // pred_fallthru
          _
      $region56: #{tpu_custom_call.1} parent=5 // pred_fallthru
        _
      %p628 = scmp.le.s32.totalorder 1, %s41
      %p629 = scmp.lt.s32.totalorder %s41, 3
      %p630 = pnand %p628, %p629
      %p631 = pneg %p630
      // Predicated region
      $region73: #{tpu_custom_call.1} parent=5 // pred_check
        _
      $region74: #{tpu_custom_call.1} parent=5 // pred_check_branch
        %633 = sbr.rel (%p630) target = $region76
      $region75: #{tpu_custom_call.1} parent=5 // pred_region
        %s634 = ssub.s32 %s41, 1
        %s635 = sand.u32 %s54, 1
        %s636 = scalar_lea.sflag [#allocation3], %s635
        %s637 = sand.u32 %s54, 1
        %s638 = smul.addr %s637, 4
        %s639 = scalar_lea.vmem [#allocation2], %s638
        // Predicated region
        $region77: #{tpu_custom_call.1} parent=75 // pred_check
          %p640 = pneg %p67
        $region78: #{tpu_custom_call.1} parent=75 // pred_check_branch
          %642 = sbr.rel (%p640) target = $region80
        $region79: #{tpu_custom_call.1} parent=75 // pred_region
          %644 = dma.done %s636, 64
        $region80: #{tpu_custom_call.1} parent=75 // pred_fallthru
          _
        %s645 = sand.u32 %s46, 1
        %s646 = scalar_lea.sflag [#allocation6], %s645
        %s647 = sand.u32 %s80, 1
        %s648 = smul.addr %s647, 64
        %s649 = scalar_lea.vmem [#allocation5], %s648
        // Predicated region
        $region81: #{tpu_custom_call.1} parent=75 // pred_check
          %p650 = pneg %p93
        $region82: #{tpu_custom_call.1} parent=75 // pred_check_branch
          %652 = sbr.rel (%p650) target = $region84
        $region83: #{tpu_custom_call.1} parent=75 // pred_region
          %654 = dma.done %s646, 1024
        $region84: #{tpu_custom_call.1} parent=75 // pred_fallthru
          _
        %s655 = sand.u32 %s46, 1
        %s656 = scalar_lea.sflag [#allocation6], %s655
        %s657 = sand.u32 %s106, 1
        %s658 = smul.addr %s657, 64
        %s659 = scalar_lea.vmem [#allocation7], %s658
        // Predicated region
        $region85: #{tpu_custom_call.1} parent=75 // pred_check
          %p660 = pneg %p119
        $region86: #{tpu_custom_call.1} parent=75 // pred_check_branch
          %662 = sbr.rel (%p660) target = $region88
        $region87: #{tpu_custom_call.1} parent=75 // pred_region
          %664 = dma.done %s656, 1024
        $region88: #{tpu_custom_call.1} parent=75 // pred_fallthru
          _
        %s665 = sand.u32 %s46, 1
        %s666 = scalar_lea.sflag [#allocation9], %s665
        %s667 = sand.u32 %s132, 1
        %s668 = smul.addr %s667, 8
        %s669 = scalar_lea.vmem [#allocation8], %s668
        // Predicated region
        $region89: #{tpu_custom_call.1} parent=75 // pred_check
          %p670 = pneg %p145
        $region90: #{tpu_custom_call.1} parent=75 // pred_check_branch
          %672 = sbr.rel (%p670) target = $region92
        $region91: #{tpu_custom_call.1} parent=75 // pred_region
          %674 = dma.done %s666, 128
        $region92: #{tpu_custom_call.1} parent=75 // pred_fallthru
          _
        // Predicated region
        $region93: #{tpu_custom_call.1} parent=75 // pred_check
          %p675 = pneg %p166
        $region94: #{tpu_custom_call.1} parent=75 // pred_check_branch
          %677 = sbr.rel (%p675) target = $region96
        $region95: #{tpu_custom_call.1} parent=75 // pred_region
          %679 = dma.done [#allocation9], 1024
        $region96: #{tpu_custom_call.1} parent=75 // pred_fallthru
          _
        // Predicated region
        $region97: #{tpu_custom_call.1} parent=75 // pred_check
          %p680 = pneg %p187
        $region98: #{tpu_custom_call.1} parent=75 // pred_check_branch
          %682 = sbr.rel (%p680) target = $region100
        $region99: #{tpu_custom_call.1} parent=75 // pred_region
          %684 = dma.done [#allocation12], 16
        $region100: #{tpu_custom_call.1} parent=75 // pred_fallthru
          _
        // Predicated region
        $region101: #{tpu_custom_call.1} parent=75 // pred_check
          %p685 = pneg %p208
        $region102: #{tpu_custom_call.1} parent=75 // pred_check_branch
          %687 = sbr.rel (%p685) target = $region104
        $region103: #{tpu_custom_call.1} parent=75 // pred_region
          %689 = dma.done [#allocation12], 12288
        $region104: #{tpu_custom_call.1} parent=75 // pred_fallthru
          _
        // Predicated region
        $region105: #{tpu_custom_call.1} parent=75 // pred_check
          %p690 = pneg %p250
        $region106: #{tpu_custom_call.1} parent=75 // pred_check_branch
          %692 = sbr.rel (%p690) target = $region108
        $region107: #{tpu_custom_call.1} parent=75 // pred_region
          %694 = dma.done [#allocation15], 2048
        $region108: #{tpu_custom_call.1} parent=75 // pred_fallthru
          _
        // Predicated region
        $region109: #{tpu_custom_call.1} parent=75 // pred_check
          %p695 = pneg %p292
        $region110: #{tpu_custom_call.1} parent=75 // pred_check_branch
          %697 = sbr.rel (%p695) target = $region112
        $region111: #{tpu_custom_call.1} parent=75 // pred_region
          %699 = dma.done [#allocation15], 2048
        $region112: #{tpu_custom_call.1} parent=75 // pred_fallthru
          _
        // Predicated region
        $region113: #{tpu_custom_call.1} parent=75 // pred_check
          %p700 = pneg %p334
        $region114: #{tpu_custom_call.1} parent=75 // pred_check_branch
          %702 = sbr.rel (%p700) target = $region116
        $region115: #{tpu_custom_call.1} parent=75 // pred_region
          %704 = dma.done [#allocation18], 1024
        $region116: #{tpu_custom_call.1} parent=75 // pred_fallthru
          _
        %s705 = sand.u32 %s54, 1
        %s706 = scalar_lea.sflag [#allocation3], %s705
        %s707 = sand.u32 %s54, 1
        %s708 = smul.addr %s707, 4
        %s709 = scalar_lea.vmem [#allocation2], %s708
        %p710 = pneg %p67
        %p711 = pneg %p64
        %s712 = sand.u32 %s46, 1
        %s713 = scalar_lea.sflag [#allocation6], %s712
        %s714 = sand.u32 %s80, 1
        %s715 = smul.addr %s714, 64
        %s716 = scalar_lea.vmem [#allocation5], %s715
        %p717 = pneg %p93
        %p718 = pneg %p90
        %s719 = sand.u32 %s46, 1
        %s720 = scalar_lea.sflag [#allocation6], %s719
        %s721 = sand.u32 %s106, 1
        %s722 = smul.addr %s721, 64
        %s723 = scalar_lea.vmem [#allocation7], %s722
        %p724 = pneg %p119
        %p725 = pneg %p116
        %s726 = sand.u32 %s46, 1
        %s727 = scalar_lea.sflag [#allocation9], %s726
        %s728 = sand.u32 %s132, 1
        %s729 = smul.addr %s728, 8
        %s730 = scalar_lea.vmem [#allocation8], %s729
        %p731 = pneg %p145
        %p732 = pneg %p142
        %p733 = pneg %p166
        %p734 = pneg %p163
        %p735 = pneg %p187
        %p736 = pneg %p184
        %p737 = pneg %p208
        %p738 = pneg %p205
        %p739 = pneg %p229
        %p740 = pneg %p226
        %p741 = pneg %p250
        %p742 = pneg %p247
        %p743 = pneg %p271
        %p744 = pneg %p268
        %p745 = pneg %p292
        %p746 = pneg %p289
        %p747 = pneg %p313
        %p748 = pneg %p310
        %p749 = pneg %p334
        %p750 = pneg %p331
        %p751 = pneg %p355
        %p752 = pneg %p352
        %p753 = pneg %p381
        %p754 = pneg %p378
        %s755 = sand.u32 %s368, 1
        %s756 = scalar_lea.sflag [#allocation4], %s755
        %s757 = sand.u32 %s368, 1
        %s758 = smul.addr %s757, 8
        %s759 = scalar_lea.vmem [#allocation19], %s758
        %p760 = pneg %p407
        %p761 = pneg %p404
        %s762 = sand.u32 %s46, 1
        %s763 = scalar_lea.sflag [#allocation21], %s762
        %s764 = sand.u32 %s394, 1
        %s765 = smul.addr %s764, 8
        %s766 = scalar_lea.vmem [#allocation20], %s765
        %p767 = pneg %p433
        %p768 = pneg %p430
        %s769 = sand.u32 %s46, 1
        %s770 = scalar_lea.sflag [#allocation21], %s769
        %s771 = sand.u32 %s420, 1
        %s772 = smul.addr %s771, 8
        %s773 = scalar_lea.vmem [#allocation22], %s772
        %v774 = vld [vmem:[%s649] sm:$0xf]
        %v775 = vld [vmem:[%s649 + $0x4] sm:$0xf]
        %v776 = vld [vmem:[%s649 + $0x8] sm:$0xf]
        %v777 = vld [vmem:[%s649 + $0xc] sm:$0xf]
        %v778 = vld [vmem:[%s649 + $0x10] sm:$0xf]
        %v779 = vld [vmem:[%s649 + $0x14] sm:$0xf]
        %v780 = vld [vmem:[%s649 + $0x18] sm:$0xf]
        %v781 = vld [vmem:[%s649 + $0x1c] sm:$0xf]
        %v782 = vld [vmem:[%s649 + $0x20] sm:$0xf]
        %v783 = vld [vmem:[%s649 + $0x24] sm:$0xf]
        %v784 = vld [vmem:[%s649 + $0x28] sm:$0xf]
        %v785 = vld [vmem:[%s649 + $0x2c] sm:$0xf]
        %v786 = vld [vmem:[%s649 + $0x30] sm:$0xf]
        %v787 = vld [vmem:[%s649 + $0x34] sm:$0xf]
        %v788 = vld [vmem:[%s649 + $0x38] sm:$0xf]
        %v789 = vld [vmem:[%s649 + $0x3c] sm:$0xf]
        %v790 = vld [vmem:[%s659] sm:$0xf]
        %v791 = vld [vmem:[%s659 + $0x4] sm:$0xf]
        %v792 = vld [vmem:[%s659 + $0x8] sm:$0xf]
        %v793 = vld [vmem:[%s659 + $0xc] sm:$0xf]
        %v794 = vld [vmem:[%s659 + $0x10] sm:$0xf]
        %v795 = vld [vmem:[%s659 + $0x14] sm:$0xf]
        %v796 = vld [vmem:[%s659 + $0x18] sm:$0xf]
        %v797 = vld [vmem:[%s659 + $0x1c] sm:$0xf]
        %v798 = vld [vmem:[%s659 + $0x20] sm:$0xf]
        %v799 = vld [vmem:[%s659 + $0x24] sm:$0xf]
        %v800 = vld [vmem:[%s659 + $0x28] sm:$0xf]
        %v801 = vld [vmem:[%s659 + $0x2c] sm:$0xf]
        %v802 = vld [vmem:[%s659 + $0x30] sm:$0xf]
        %v803 = vld [vmem:[%s659 + $0x34] sm:$0xf]
        %v804 = vld [vmem:[%s659 + $0x38] sm:$0xf]
        %v805 = vld [vmem:[%s659 + $0x3c] sm:$0xf]
        %v806 = vld [vmem:[%s669] sm:$0xff]
        %v807 = vld [vmem:[%s639] sm:$0xf]
        %v808 = vld [vmem:[#allocation10] sm:$0xf]
        %v809 = vld [vmem:[#allocation10 + $0x4] sm:$0xf]
        %v810 = vld [vmem:[#allocation10 + $0x8] sm:$0xf]
        %v811 = vld [vmem:[#allocation10 + $0xc] sm:$0xf]
        %v812 = vld [vmem:[#allocation10 + $0x10] sm:$0xf]
        %v813 = vld [vmem:[#allocation10 + $0x14] sm:$0xf]
        %v814 = vld [vmem:[#allocation10 + $0x18] sm:$0xf]
        %v815 = vld [vmem:[#allocation10 + $0x1c] sm:$0xf]
        %v816 = vld [vmem:[#allocation10 + $0x20] sm:$0xf]
        %v817 = vld [vmem:[#allocation10 + $0x24] sm:$0xf]
        %v818 = vld [vmem:[#allocation10 + $0x28] sm:$0xf]
        %v819 = vld [vmem:[#allocation10 + $0x2c] sm:$0xf]
        %v820 = vld [vmem:[#allocation10 + $0x30] sm:$0xf]
        %v821 = vld [vmem:[#allocation10 + $0x34] sm:$0xf]
        %v822 = vld [vmem:[#allocation10 + $0x38] sm:$0xf]
        %v823 = vld [vmem:[#allocation10 + $0x3c] sm:$0xf]
        %v824 = vld [vmem:[#allocation11] sm:$0x1]
        %v826 = vperm.slane %v824, 0
        %v844 = vunpack.c.l.b16 %v808
        %v845 = vunpack.c.l.b16 %v809
        %v846 = vunpack.c.l.b16 %v810
        %v847 = vunpack.c.l.b16 %v811
        %v848 = vunpack.c.l.b16 %v812
        %v849 = vunpack.c.l.b16 %v813
        %v850 = vunpack.c.l.b16 %v814
        %v851 = vunpack.c.l.b16 %v815
        %v852 = vunpack.c.l.b16 %v816
        %v853 = vunpack.c.l.b16 %v817
        %v854 = vunpack.c.l.b16 %v818
        %v855 = vunpack.c.l.b16 %v819
        %v856 = vunpack.c.l.b16 %v820
        %v857 = vunpack.c.l.b16 %v821
        %v858 = vunpack.c.l.b16 %v822
        %v859 = vunpack.c.l.b16 %v823
        %v860 = vpack.c.b16 %v845, %v844
        %v861 = vpack.c.b16 %v847, %v846
        %v862 = vpack.c.b16 %v849, %v848
        %v863 = vpack.c.b16 %v851, %v850
        %v864 = vpack.c.b16 %v853, %v852
        %v865 = vpack.c.b16 %v855, %v854
        %v866 = vpack.c.b16 %v857, %v856
        %v867 = vpack.c.b16 %v859, %v858
        %876 = vmatpush.bf16.msra.mxu0 %v867
        %877 = vmatpush.bf16.msra.mxu0 %v866
        %878 = vmatpush.bf16.msra.mxu0 %v865
        %879 = vmatpush.bf16.msra.mxu0 %v864
        %880 = vmatpush.bf16.msra.mxu0 %v863
        %881 = vmatpush.bf16.msra.mxu0 %v862
        %882 = vmatpush.bf16.msra.mxu0 %v861
        %883 = vmatpush.bf16.msra.mxu0 %v860
        %884 = vmatmul.bf16.gmra.mxu0 %v807
        %v885 = vpop.f32.mrf.mxu0
        %v886 = vadd.f32 %v826, %v885
        %v887 = vpop.f32.mrf.mxu0
        %888 = vdwg.mxu0
        %v889 = vmax.f32 %v886, 0.0
        %v890 = vlaneseq
        %v891 = vshrl.u32 %v890, 7
        %v892 = vlaneseq
        %v893 = vand.u32 %v892, 127
        %vm894 = vcmp.lt.s32.totalorder %v893, 8
        loop: start=0, step=1, limit=2
        $region117: #{tpu_custom_call.1} parent=75 // loop_pre_header
          _
        $region118: #{tpu_custom_call.1} parent=75 // loop_header
          %s896 = sphi 0, %s900
          %p897 = scmp.ge.s32.totalorder %s896, 2
          %v901 = vphi %v889, %v1624
        $region119: #{tpu_custom_call.1} parent=75 // loop_header_branch
          %899 = sbr.rel (%p897) target = $region123
        $region120: #{tpu_custom_call.1} parent=75 // loop_body
          %vm902 = vcmp.ge.s32.totalorder %v891, 2
          %v903 = vrot.slane %v901, 6
          %v904 = vsel %vm902, 1, 0
          %vm905 = vcmp.eq.s32.totalorder %v904, 1
          %v906 = vsel %vm905, %v903, 0.0
          %v907 = vpack.c.bf16 %v906, %v906
          %vm908 = vcmp.ge.s32.totalorder %v891, 1
          %v909 = vrot.slane %v901, 7
          %v910 = vsel %vm908, 1, 0
          %vm911 = vcmp.eq.s32.totalorder %v910, 1
          %v912 = vsel %vm911, %v909, 0.0
          %v913 = vpack.c.bf16 %v912, %v912
          %v914 = vpack.c.bf16 %v901, %v901
          %s915 = smul.u32 %s896, 96
          %s916 = smul.addr %s915, 4
          %s917 = scalar_lea.vmem [#allocation13], %s916
          %v918 = vld [vmem:[%s917] sm:$0xff]
          %v919 = vld [vmem:[%s917 + $0x8] sm:$0xff]
          %v920 = vld [vmem:[%s917 + $0x10] sm:$0xff]
          %v921 = vld [vmem:[%s917 + $0x18] sm:$0xff]
          %v922 = vld [vmem:[%s917 + $0x20] sm:$0xff]
          %v923 = vld [vmem:[%s917 + $0x28] sm:$0xff]
          %v924 = vld [vmem:[%s917 + $0x30] sm:$0xff]
          %v925 = vld [vmem:[%s917 + $0x38] sm:$0xff]
          %v926 = vld [vmem:[%s917 + $0x40] sm:$0xff]
          %v927 = vld [vmem:[%s917 + $0x48] sm:$0xff]
          %v928 = vld [vmem:[%s917 + $0x50] sm:$0xff]
          %v929 = vld [vmem:[%s917 + $0x58] sm:$0xff]
          %v930 = vld [vmem:[%s917 + $0x60] sm:$0xff]
          %v931 = vld [vmem:[%s917 + $0x68] sm:$0xff]
          %v932 = vld [vmem:[%s917 + $0x70] sm:$0xff]
          %v933 = vld [vmem:[%s917 + $0x78] sm:$0xff]
          %v934 = vld [vmem:[%s917 + $0x80] sm:$0xff]
          %v935 = vld [vmem:[%s917 + $0x88] sm:$0xff]
          %v936 = vld [vmem:[%s917 + $0x90] sm:$0xff]
          %v937 = vld [vmem:[%s917 + $0x98] sm:$0xff]
          %v938 = vld [vmem:[%s917 + $0xa0] sm:$0xff]
          %v939 = vld [vmem:[%s917 + $0xa8] sm:$0xff]
          %v940 = vld [vmem:[%s917 + $0xb0] sm:$0xff]
          %v941 = vld [vmem:[%s917 + $0xb8] sm:$0xff]
          %v942 = vld [vmem:[%s917 + $0xc0] sm:$0xff]
          %v943 = vld [vmem:[%s917 + $0xc8] sm:$0xff]
          %v944 = vld [vmem:[%s917 + $0xd0] sm:$0xff]
          %v945 = vld [vmem:[%s917 + $0xd8] sm:$0xff]
          %v946 = vld [vmem:[%s917 + $0xe0] sm:$0xff]
          %v947 = vld [vmem:[%s917 + $0xe8] sm:$0xff]
          %v948 = vld [vmem:[%s917 + $0xf0] sm:$0xff]
          %v949 = vld [vmem:[%s917 + $0xf8] sm:$0xff]
          %v950 = vld [vmem:[%s917 + $0x100] sm:$0xff]
          %v951 = vld [vmem:[%s917 + $0x108] sm:$0xff]
          %v952 = vld [vmem:[%s917 + $0x110] sm:$0xff]
          %v953 = vld [vmem:[%s917 + $0x118] sm:$0xff]
          %v954 = vld [vmem:[%s917 + $0x120] sm:$0xff]
          %v955 = vld [vmem:[%s917 + $0x128] sm:$0xff]
          %v956 = vld [vmem:[%s917 + $0x130] sm:$0xff]
          %v957 = vld [vmem:[%s917 + $0x138] sm:$0xff]
          %v958 = vld [vmem:[%s917 + $0x140] sm:$0xff]
          %v959 = vld [vmem:[%s917 + $0x148] sm:$0xff]
          %v960 = vld [vmem:[%s917 + $0x150] sm:$0xff]
          %v961 = vld [vmem:[%s917 + $0x158] sm:$0xff]
          %v962 = vld [vmem:[%s917 + $0x160] sm:$0xff]
          %v963 = vld [vmem:[%s917 + $0x168] sm:$0xff]
          %v964 = vld [vmem:[%s917 + $0x170] sm:$0xff]
          %v965 = vld [vmem:[%s917 + $0x178] sm:$0xff]
          %s966 = smul.u32 %s896, 2
          %s967 = scalar_lea.vmem %s7, %s966
          %v968 = vld [vmem:[%s967] sm:$0x3]
          %v970 = vperm.slane %v968, 0
          %v971 = vperm.slane %v968, 1
          %v1022 = vunpack.c.l.b16 %v918
          %v1023 = vunpack.c.h.b16 %v918
          %v1024 = vunpack.c.l.b16 %v919
          %v1025 = vunpack.c.h.b16 %v919
          %v1026 = vunpack.c.l.b16 %v920
          %v1027 = vunpack.c.h.b16 %v920
          %v1028 = vunpack.c.l.b16 %v921
          %v1029 = vunpack.c.h.b16 %v921
          %v1030 = vunpack.c.l.b16 %v922
          %v1031 = vunpack.c.h.b16 %v922
          %v1032 = vunpack.c.l.b16 %v923
          %v1033 = vunpack.c.h.b16 %v923
          %v1034 = vunpack.c.l.b16 %v924
          %v1035 = vunpack.c.h.b16 %v924
          %v1036 = vunpack.c.l.b16 %v925
          %v1037 = vunpack.c.h.b16 %v925
          %v1038 = vunpack.c.l.b16 %v926
          %v1039 = vunpack.c.h.b16 %v926
          %v1040 = vunpack.c.l.b16 %v927
          %v1041 = vunpack.c.h.b16 %v927
          %v1042 = vunpack.c.l.b16 %v928
          %v1043 = vunpack.c.h.b16 %v928
          %v1044 = vunpack.c.l.b16 %v929
          %v1045 = vunpack.c.h.b16 %v929
          %v1046 = vunpack.c.l.b16 %v930
          %v1047 = vunpack.c.h.b16 %v930
          %v1048 = vunpack.c.l.b16 %v931
          %v1049 = vunpack.c.h.b16 %v931
          %v1050 = vunpack.c.l.b16 %v932
          %v1051 = vunpack.c.h.b16 %v932
          %v1052 = vunpack.c.l.b16 %v933
          %v1053 = vunpack.c.h.b16 %v933
          %v1054 = vunpack.c.l.b16 %v934
          %v1055 = vunpack.c.h.b16 %v934
          %v1056 = vunpack.c.l.b16 %v935
          %v1057 = vunpack.c.h.b16 %v935
          %v1058 = vunpack.c.l.b16 %v936
          %v1059 = vunpack.c.h.b16 %v936
          %v1060 = vunpack.c.l.b16 %v937
          %v1061 = vunpack.c.h.b16 %v937
          %v1062 = vunpack.c.l.b16 %v938
          %v1063 = vunpack.c.h.b16 %v938
          %v1064 = vunpack.c.l.b16 %v939
          %v1065 = vunpack.c.h.b16 %v939
          %v1066 = vunpack.c.l.b16 %v940
          %v1067 = vunpack.c.h.b16 %v940
          %v1068 = vunpack.c.l.b16 %v941
          %v1069 = vunpack.c.h.b16 %v941
          %v1070 = vunpack.c.l.b16 %v942
          %v1071 = vunpack.c.h.b16 %v942
          %v1072 = vunpack.c.l.b16 %v943
          %v1073 = vunpack.c.h.b16 %v943
          %v1074 = vunpack.c.l.b16 %v944
          %v1075 = vunpack.c.h.b16 %v944
          %v1076 = vunpack.c.l.b16 %v945
          %v1077 = vunpack.c.h.b16 %v945
          %v1078 = vunpack.c.l.b16 %v946
          %v1079 = vunpack.c.h.b16 %v946
          %v1080 = vunpack.c.l.b16 %v947
          %v1081 = vunpack.c.h.b16 %v947
          %v1082 = vunpack.c.l.b16 %v948
          %v1083 = vunpack.c.h.b16 %v948
          %v1084 = vunpack.c.l.b16 %v949
          %v1085 = vunpack.c.h.b16 %v949
          %v1086 = vunpack.c.l.b16 %v950
          %v1087 = vunpack.c.h.b16 %v950
          %v1088 = vunpack.c.l.b16 %v951
          %v1089 = vunpack.c.h.b16 %v951
          %v1090 = vunpack.c.l.b16 %v952
          %v1091 = vunpack.c.h.b16 %v952
          %v1092 = vunpack.c.l.b16 %v953
          %v1093 = vunpack.c.h.b16 %v953
          %v1094 = vunpack.c.l.b16 %v954
          %v1095 = vunpack.c.h.b16 %v954
          %v1096 = vunpack.c.l.b16 %v955
          %v1097 = vunpack.c.h.b16 %v955
          %v1098 = vunpack.c.l.b16 %v956
          %v1099 = vunpack.c.h.b16 %v956
          %v1100 = vunpack.c.l.b16 %v957
          %v1101 = vunpack.c.h.b16 %v957
          %v1102 = vunpack.c.l.b16 %v958
          %v1103 = vunpack.c.h.b16 %v958
          %v1104 = vunpack.c.l.b16 %v959
          %v1105 = vunpack.c.h.b16 %v959
          %v1106 = vunpack.c.l.b16 %v960
          %v1107 = vunpack.c.h.b16 %v960
          %v1108 = vunpack.c.l.b16 %v961
          %v1109 = vunpack.c.h.b16 %v961
          %v1110 = vunpack.c.l.b16 %v962
          %v1111 = vunpack.c.h.b16 %v962
          %v1112 = vunpack.c.l.b16 %v963
          %v1113 = vunpack.c.h.b16 %v963
          %v1114 = vunpack.c.l.b16 %v964
          %v1115 = vunpack.c.h.b16 %v964
          %v1116 = vunpack.c.l.b16 %v965
          %v1117 = vunpack.c.h.b16 %v965
          %v1118 = vpack.c.b16 %v1024, %v1022
          %v1119 = vpack.c.b16 %v1025, %v1023
          %v1120 = vpack.c.b16 %v1028, %v1026
          %v1121 = vpack.c.b16 %v1029, %v1027
          %v1122 = vpack.c.b16 %v1032, %v1030
          %v1123 = vpack.c.b16 %v1033, %v1031
          %v1124 = vpack.c.b16 %v1036, %v1034
          %v1125 = vpack.c.b16 %v1037, %v1035
          %v1126 = vpack.c.b16 %v1040, %v1038
          %v1127 = vpack.c.b16 %v1041, %v1039
          %v1128 = vpack.c.b16 %v1044, %v1042
          %v1129 = vpack.c.b16 %v1045, %v1043
          %v1130 = vpack.c.b16 %v1048, %v1046
          %v1131 = vpack.c.b16 %v1049, %v1047
          %v1132 = vpack.c.b16 %v1052, %v1050
          %v1133 = vpack.c.b16 %v1053, %v1051
          %v1134 = vpack.c.b16 %v1056, %v1054
          %v1135 = vpack.c.b16 %v1057, %v1055
          %v1136 = vpack.c.b16 %v1060, %v1058
          %v1137 = vpack.c.b16 %v1061, %v1059
          %v1138 = vpack.c.b16 %v1064, %v1062
          %v1139 = vpack.c.b16 %v1065, %v1063
          %v1140 = vpack.c.b16 %v1068, %v1066
          %v1141 = vpack.c.b16 %v1069, %v1067
          %v1142 = vpack.c.b16 %v1072, %v1070
          %v1143 = vpack.c.b16 %v1073, %v1071
          %v1144 = vpack.c.b16 %v1076, %v1074
          %v1145 = vpack.c.b16 %v1077, %v1075
          %v1146 = vpack.c.b16 %v1080, %v1078
          %v1147 = vpack.c.b16 %v1081, %v1079
          %v1148 = vpack.c.b16 %v1084, %v1082
          %v1149 = vpack.c.b16 %v1085, %v1083
          %v1150 = vpack.c.b16 %v1088, %v1086
          %v1151 = vpack.c.b16 %v1089, %v1087
          %v1152 = vpack.c.b16 %v1092, %v1090
          %v1153 = vpack.c.b16 %v1093, %v1091
          %v1154 = vpack.c.b16 %v1096, %v1094
          %v1155 = vpack.c.b16 %v1097, %v1095
          %v1156 = vpack.c.b16 %v1100, %v1098
          %v1157 = vpack.c.b16 %v1101, %v1099
          %v1158 = vpack.c.b16 %v1104, %v1102
          %v1159 = vpack.c.b16 %v1105, %v1103
          %v1160 = vpack.c.b16 %v1108, %v1106
          %v1161 = vpack.c.b16 %v1109, %v1107
          %v1162 = vpack.c.b16 %v1112, %v1110
          %v1163 = vpack.c.b16 %v1113, %v1111
          %v1164 = vpack.c.b16 %v1116, %v1114
          %v1165 = vpack.c.b16 %v1117, %v1115
          %1214 = vmatpush.bf16.msra.mxu0 %v1132
          %1215 = vmatpush.bf16.msra.mxu0 %v1130
          %1216 = vmatpush.bf16.msra.mxu0 %v1128
          %1217 = vmatpush.bf16.msra.mxu0 %v1126
          %1218 = vmatpush.bf16.msra.mxu0 %v1124
          %1219 = vmatpush.bf16.msra.mxu0 %v1122
          %1220 = vmatpush.bf16.msra.mxu0 %v1120
          %1221 = vmatpush.bf16.msra.mxu0 %v1118
          %1222 = vmatmul.bf16.gmra.mxu0 %v907
          %v1223 = vpop.f32.mrf.mxu0
          %v1224 = vadd.f32 %v970, %v1223
          %v1225 = vpop.f32.mrf.mxu0
          %1226 = vdwg.mxu0
          %1227 = vmatpush.bf16.msra.mxu0 %v1148
          %1228 = vmatpush.bf16.msra.mxu0 %v1146
          %1229 = vmatpush.bf16.msra.mxu0 %v1144
          %1230 = vmatpush.bf16.msra.mxu0 %v1142
          %1231 = vmatpush.bf16.msra.mxu0 %v1140
          %1232 = vmatpush.bf16.msra.mxu0 %v1138
          %1233 = vmatpush.bf16.msra.mxu0 %v1136
          %1234 = vmatpush.bf16.msra.mxu0 %v1134
          %1235 = vmatmul.bf16.gmra.mxu0 %v913
          %v1236 = vpop.f32.mrf.mxu0
          %v1237 = vadd.f32 %v1224, %v1236
          %v1238 = vpop.f32.mrf.mxu0
          %1239 = vdwg.mxu0
          %1240 = vmatpush.bf16.msra.mxu0 %v1164
          %1241 = vmatpush.bf16.msra.mxu0 %v1162
          %1242 = vmatpush.bf16.msra.mxu0 %v1160
          %1243 = vmatpush.bf16.msra.mxu0 %v1158
          %1244 = vmatpush.bf16.msra.mxu0 %v1156
          %1245 = vmatpush.bf16.msra.mxu0 %v1154
          %1246 = vmatpush.bf16.msra.mxu0 %v1152
          %1247 = vmatpush.bf16.msra.mxu0 %v1150
          %1248 = vmatmul.bf16.gmra.mxu0 %v914
          %v1249 = vpop.f32.mrf.mxu0
          %v1250 = vadd.f32 %v1237, %v1249
          %v1251 = vpop.f32.mrf.mxu0
          %1252 = vdwg.mxu0
          %1253 = vmatpush.bf16.msra.mxu0 %v1133
          %1254 = vmatpush.bf16.msra.mxu0 %v1131
          %1255 = vmatpush.bf16.msra.mxu0 %v1129
          %1256 = vmatpush.bf16.msra.mxu0 %v1127
          %1257 = vmatpush.bf16.msra.mxu0 %v1125
          %1258 = vmatpush.bf16.msra.mxu0 %v1123
          %1259 = vmatpush.bf16.msra.mxu0 %v1121
          %1260 = vmatpush.bf16.msra.mxu0 %v1119
          %1261 = vmatmul.bf16.gmra.mxu0 %v907
          %v1262 = vpop.f32.mrf.mxu0
          %v1263 = vadd.f32 %v971, %v1262
          %v1264 = vpop.f32.mrf.mxu0
          %1265 = vdwg.mxu0
          %1266 = vmatpush.bf16.msra.mxu0 %v1149
          %1267 = vmatpush.bf16.msra.mxu0 %v1147
          %1268 = vmatpush.bf16.msra.mxu0 %v1145
          %1269 = vmatpush.bf16.msra.mxu0 %v1143
          %1270 = vmatpush.bf16.msra.mxu0 %v1141
          %1271 = vmatpush.bf16.msra.mxu0 %v1139
          %1272 = vmatpush.bf16.msra.mxu0 %v1137
          %1273 = vmatpush.bf16.msra.mxu0 %v1135
          %1274 = vmatmul.bf16.gmra.mxu0 %v913
          %v1275 = vpop.f32.mrf.mxu0
          %v1276 = vadd.f32 %v1263, %v1275
          %v1277 = vpop.f32.mrf.mxu0
          %1278 = vdwg.mxu0
          %1279 = vmatpush.bf16.msra.mxu0 %v1165
          %1280 = vmatpush.bf16.msra.mxu0 %v1163
          %1281 = vmatpush.bf16.msra.mxu0 %v1161
          %1282 = vmatpush.bf16.msra.mxu0 %v1159
          %1283 = vmatpush.bf16.msra.mxu0 %v1157
          %1284 = vmatpush.bf16.msra.mxu0 %v1155
          %1285 = vmatpush.bf16.msra.mxu0 %v1153
          %1286 = vmatpush.bf16.msra.mxu0 %v1151
          %1287 = vmatmul.bf16.gmra.mxu0 %v914
          %v1288 = vpop.f32.mrf.mxu0
          %v1289 = vadd.f32 %v1276, %v1288
          %v1290 = vpop.f32.mrf.mxu0
          %1291 = vdwg.mxu0
          %v1292 = vxor.u32 %v1289, 2147483648
          %v1293 = vmul.f32 %v1292, 1.442695
          %v1294 = vpow.pop %v1293
          %v1295 = vadd.f32 %v1294, 1.0
          %v1296 = vrcp.pop %v1295
          %v1297 = vmul.f32 %v1295, %v1296
          %v1298 = vsub.f32 1.0, %v1297
          %v1299 = vmul.f32 %v1296, %v1298
          %v1300 = vadd.f32 %v1296, %v1299
          %vm1301 = vweird.f32 %v1295
          %vm1302 = vweird.f32 %v1296
          %vm1303 = vmor %vm1301, %vm1302
          %v1304 = vsel %vm1303, %v1296, %v1300
          %v1305 = vand.u32 2147483647, %v1295
          %vm1306 = vcmp.eq.f32.partialorder %v1305, 8.507059e+37
          %v1307 = vand.u32 %v1295, 2147483648
          %v1308 = vor.u32 1.1754944e-38, %v1307
          %v1309 = vsel %vm1306, %v1308, %v1304
          %v1310 = vmul.f32 1.0, %v1309
          %v1311 = vmul.f32 %v1250, %v1310
          %v1312 = vadd.f32 %v1311, %v806
          %s1313 = smul.u32 %s896, 16
          %s1314 = smul.addr %s1313, 4
          %s1315 = scalar_lea.vmem [#allocation14], %s1314
          %v1316 = vld [vmem:[%s1315] sm:$0xf]
          %v1317 = vld [vmem:[%s1315 + $0x4] sm:$0xf]
          %v1318 = vld [vmem:[%s1315 + $0x8] sm:$0xf]
          %v1319 = vld [vmem:[%s1315 + $0xc] sm:$0xf]
          %v1320 = vld [vmem:[%s1315 + $0x10] sm:$0xf]
          %v1321 = vld [vmem:[%s1315 + $0x14] sm:$0xf]
          %v1322 = vld [vmem:[%s1315 + $0x18] sm:$0xf]
          %v1323 = vld [vmem:[%s1315 + $0x1c] sm:$0xf]
          %v1324 = vld [vmem:[%s1315 + $0x20] sm:$0xf]
          %v1325 = vld [vmem:[%s1315 + $0x24] sm:$0xf]
          %v1326 = vld [vmem:[%s1315 + $0x28] sm:$0xf]
          %v1327 = vld [vmem:[%s1315 + $0x2c] sm:$0xf]
          %v1328 = vld [vmem:[%s1315 + $0x30] sm:$0xf]
          %v1329 = vld [vmem:[%s1315 + $0x34] sm:$0xf]
          %v1330 = vld [vmem:[%s1315 + $0x38] sm:$0xf]
          %v1331 = vld [vmem:[%s1315 + $0x3c] sm:$0xf]
          %v1332 = vpack.c.bf16 %v1312, %v1312
          %s1333 = scalar_lea.vmem %s9, %s896
          %v1334 = vld [vmem:[%s1333] sm:$0x1]
          %v1336 = vperm.slane %v1334, 0
          %v1354 = vunpack.c.l.b16 %v1316
          %v1355 = vunpack.c.l.b16 %v1317
          %v1356 = vunpack.c.l.b16 %v1318
          %v1357 = vunpack.c.l.b16 %v1319
          %v1358 = vunpack.c.l.b16 %v1320
          %v1359 = vunpack.c.l.b16 %v1321
          %v1360 = vunpack.c.l.b16 %v1322
          %v1361 = vunpack.c.l.b16 %v1323
          %v1362 = vunpack.c.l.b16 %v1324
          %v1363 = vunpack.c.l.b16 %v1325
          %v1364 = vunpack.c.l.b16 %v1326
          %v1365 = vunpack.c.l.b16 %v1327
          %v1366 = vunpack.c.l.b16 %v1328
          %v1367 = vunpack.c.l.b16 %v1329
          %v1368 = vunpack.c.l.b16 %v1330
          %v1369 = vunpack.c.l.b16 %v1331
          %v1370 = vpack.c.b16 %v1355, %v1354
          %v1371 = vpack.c.b16 %v1357, %v1356
          %v1372 = vpack.c.b16 %v1359, %v1358
          %v1373 = vpack.c.b16 %v1361, %v1360
          %v1374 = vpack.c.b16 %v1363, %v1362
          %v1375 = vpack.c.b16 %v1365, %v1364
          %v1376 = vpack.c.b16 %v1367, %v1366
          %v1377 = vpack.c.b16 %v1369, %v1368
          %1386 = vmatpush.bf16.msra.mxu0 %v1377
          %1387 = vmatpush.bf16.msra.mxu0 %v1376
          %1388 = vmatpush.bf16.msra.mxu0 %v1375
          %1389 = vmatpush.bf16.msra.mxu0 %v1374
          %1390 = vmatpush.bf16.msra.mxu0 %v1373
          %1391 = vmatpush.bf16.msra.mxu0 %v1372
          %1392 = vmatpush.bf16.msra.mxu0 %v1371
          %1393 = vmatpush.bf16.msra.mxu0 %v1370
          %1394 = vmatmul.bf16.gmra.mxu0 %v1332
          %v1395 = vpop.f32.mrf.mxu0
          %v1396 = vadd.f32 %v1336, %v1395
          %v1397 = vpop.f32.mrf.mxu0
          %1398 = vdwg.mxu0
          %v1399 = vpack.c.bf16 %v1396, %v1396
          %v1416 = vunpack.c.l.b16 %v774
          %v1417 = vunpack.c.l.b16 %v775
          %v1418 = vunpack.c.l.b16 %v776
          %v1419 = vunpack.c.l.b16 %v777
          %v1420 = vunpack.c.l.b16 %v778
          %v1421 = vunpack.c.l.b16 %v779
          %v1422 = vunpack.c.l.b16 %v780
          %v1423 = vunpack.c.l.b16 %v781
          %v1424 = vunpack.c.l.b16 %v782
          %v1425 = vunpack.c.l.b16 %v783
          %v1426 = vunpack.c.l.b16 %v784
          %v1427 = vunpack.c.l.b16 %v785
          %v1428 = vunpack.c.l.b16 %v786
          %v1429 = vunpack.c.l.b16 %v787
          %v1430 = vunpack.c.l.b16 %v788
          %v1431 = vunpack.c.l.b16 %v789
          %v1432 = vpack.c.b16 %v1417, %v1416
          %v1433 = vpack.c.b16 %v1419, %v1418
          %v1434 = vpack.c.b16 %v1421, %v1420
          %v1435 = vpack.c.b16 %v1423, %v1422
          %v1436 = vpack.c.b16 %v1425, %v1424
          %v1437 = vpack.c.b16 %v1427, %v1426
          %v1438 = vpack.c.b16 %v1429, %v1428
          %v1439 = vpack.c.b16 %v1431, %v1430
          %1448 = vmatpush.bf16.xpose.msra.mxu0 %v1439
          %1449 = vmatpush.bf16.xpose.msra.mxu0 %v1438
          %1450 = vmatpush.bf16.xpose.msra.mxu0 %v1437
          %1451 = vmatpush.bf16.xpose.msra.mxu0 %v1436
          %1452 = vmatpush.bf16.xpose.msra.mxu0 %v1435
          %1453 = vmatpush.bf16.xpose.msra.mxu0 %v1434
          %1454 = vmatpush.bf16.xpose.msra.mxu0 %v1433
          %1455 = vmatpush.bf16.xpose.msra.mxu0 %v1432
          %1456 = vmatmul.bf16.gmra.mxu0 %v1399
          %v1457 = vpop.f32.mrf.mxu0
          %v1458 = vadd.f32 0.0, %v1457
          %v1459 = vpop.f32.mrf.mxu0
          %1460 = vdwg.mxu0
          %v1461 = vsel %vm894, %v1458, -1e+30
          %1462 = vmax.xlane.f32.xlu0 %v1461
          %v1463 = vpop.xlane.xlu0 %1462
          %v1464 = vsub.f32 %v1461, %v1463
          %v1465 = vmul.f32 %v1464, 1.442695
          %v1466 = vpow.pop %v1465
          %1467 = vadd.xlane.f32.xlu0 %v1466
          %v1468 = vpop.xlane.xlu0 %1467
          %v1469 = vrcp.pop %v1468
          %v1470 = vmul.f32 %v1466, %v1469
          %v1471 = vpack.c.bf16 %v1470, %v1470
          %s1472 = smul.addr %s896, 4
          %s1473 = scalar_lea.vmem %s766, %s1472 [#allocation20]
          %1474 = vst [vmem:[%s1473] sm:$0xf] %v1471
          %v1491 = vunpack.c.l.b16 %v790
          %v1492 = vunpack.c.l.b16 %v791
          %v1493 = vunpack.c.l.b16 %v792
          %v1494 = vunpack.c.l.b16 %v793
          %v1495 = vunpack.c.l.b16 %v794
          %v1496 = vunpack.c.l.b16 %v795
          %v1497 = vunpack.c.l.b16 %v796
          %v1498 = vunpack.c.l.b16 %v797
          %v1499 = vunpack.c.l.b16 %v798
          %v1500 = vunpack.c.l.b16 %v799
          %v1501 = vunpack.c.l.b16 %v800
          %v1502 = vunpack.c.l.b16 %v801
          %v1503 = vunpack.c.l.b16 %v802
          %v1504 = vunpack.c.l.b16 %v803
          %v1505 = vunpack.c.l.b16 %v804
          %v1506 = vunpack.c.l.b16 %v805
          %v1507 = vpack.c.b16 %v1492, %v1491
          %v1508 = vpack.c.b16 %v1494, %v1493
          %v1509 = vpack.c.b16 %v1496, %v1495
          %v1510 = vpack.c.b16 %v1498, %v1497
          %v1511 = vpack.c.b16 %v1500, %v1499
          %v1512 = vpack.c.b16 %v1502, %v1501
          %v1513 = vpack.c.b16 %v1504, %v1503
          %v1514 = vpack.c.b16 %v1506, %v1505
          %1523 = vmatpush.bf16.msra.mxu0 %v1514
          %1524 = vmatpush.bf16.msra.mxu0 %v1513
          %1525 = vmatpush.bf16.msra.mxu0 %v1512
          %1526 = vmatpush.bf16.msra.mxu0 %v1511
          %1527 = vmatpush.bf16.msra.mxu0 %v1510
          %1528 = vmatpush.bf16.msra.mxu0 %v1509
          %1529 = vmatpush.bf16.msra.mxu0 %v1508
          %1530 = vmatpush.bf16.msra.mxu0 %v1507
          %1531 = vmatmul.bf16.gmra.mxu0 %v1471
          %v1532 = vpop.f32.mrf.mxu0
          %v1533 = vadd.f32 0.0, %v1532
          %v1534 = vpop.f32.mrf.mxu0
          %1535 = vdwg.mxu0
          %s1536 = smul.addr %s1313, 4
          %s1537 = scalar_lea.vmem [#allocation16], %s1536
          %v1538 = vld [vmem:[%s1537] sm:$0xf]
          %v1539 = vld [vmem:[%s1537 + $0x4] sm:$0xf]
          %v1540 = vld [vmem:[%s1537 + $0x8] sm:$0xf]
          %v1541 = vld [vmem:[%s1537 + $0xc] sm:$0xf]
          %v1542 = vld [vmem:[%s1537 + $0x10] sm:$0xf]
          %v1543 = vld [vmem:[%s1537 + $0x14] sm:$0xf]
          %v1544 = vld [vmem:[%s1537 + $0x18] sm:$0xf]
          %v1545 = vld [vmem:[%s1537 + $0x1c] sm:$0xf]
          %v1546 = vld [vmem:[%s1537 + $0x20] sm:$0xf]
          %v1547 = vld [vmem:[%s1537 + $0x24] sm:$0xf]
          %v1548 = vld [vmem:[%s1537 + $0x28] sm:$0xf]
          %v1549 = vld [vmem:[%s1537 + $0x2c] sm:$0xf]
          %v1550 = vld [vmem:[%s1537 + $0x30] sm:$0xf]
          %v1551 = vld [vmem:[%s1537 + $0x34] sm:$0xf]
          %v1552 = vld [vmem:[%s1537 + $0x38] sm:$0xf]
          %v1553 = vld [vmem:[%s1537 + $0x3c] sm:$0xf]
          %v1554 = vpack.c.bf16 %v1533, %v1533
          %s1555 = scalar_lea.vmem %s11, %s896
          %v1556 = vld [vmem:[%s1555] sm:$0x1]
          %v1558 = vperm.slane %v1556, 0
          %v1576 = vunpack.c.l.b16 %v1538
          %v1577 = vunpack.c.l.b16 %v1539
          %v1578 = vunpack.c.l.b16 %v1540
          %v1579 = vunpack.c.l.b16 %v1541
          %v1580 = vunpack.c.l.b16 %v1542
          %v1581 = vunpack.c.l.b16 %v1543
          %v1582 = vunpack.c.l.b16 %v1544
          %v1583 = vunpack.c.l.b16 %v1545
          %v1584 = vunpack.c.l.b16 %v1546
          %v1585 = vunpack.c.l.b16 %v1547
          %v1586 = vunpack.c.l.b16 %v1548
          %v1587 = vunpack.c.l.b16 %v1549
          %v1588 = vunpack.c.l.b16 %v1550
          %v1589 = vunpack.c.l.b16 %v1551
          %v1590 = vunpack.c.l.b16 %v1552
          %v1591 = vunpack.c.l.b16 %v1553
          %v1592 = vpack.c.b16 %v1577, %v1576
          %v1593 = vpack.c.b16 %v1579, %v1578
          %v1594 = vpack.c.b16 %v1581, %v1580
          %v1595 = vpack.c.b16 %v1583, %v1582
          %v1596 = vpack.c.b16 %v1585, %v1584
          %v1597 = vpack.c.b16 %v1587, %v1586
          %v1598 = vpack.c.b16 %v1589, %v1588
          %v1599 = vpack.c.b16 %v1591, %v1590
          %1608 = vmatpush.bf16.msra.mxu0 %v1599
          %1609 = vmatpush.bf16.msra.mxu0 %v1598
          %1610 = vmatpush.bf16.msra.mxu0 %v1597
          %1611 = vmatpush.bf16.msra.mxu0 %v1596
          %1612 = vmatpush.bf16.msra.mxu0 %v1595
          %1613 = vmatpush.bf16.msra.mxu0 %v1594
          %1614 = vmatpush.bf16.msra.mxu0 %v1593
          %1615 = vmatpush.bf16.msra.mxu0 %v1592
          %1616 = vmatmul.bf16.gmra.mxu0 %v1554
          %v1617 = vpop.f32.mrf.mxu0
          %v1618 = vadd.f32 %v1558, %v1617
          %v1619 = vpop.f32.mrf.mxu0
          %1620 = vdwg.mxu0
          %v1621 = vadd.f32 %v1618, %v1312
          %v1622 = vmul.f32 %v1621, 0.70710677
          %v1623 = vadd.f32 %v1622, %v901
          %v1624 = vmul.f32 %v1623, 0.70710677
        $region121: #{tpu_custom_call.1} parent=75 // loop_footer
          %s900 = sadd.s32 1, %s896
        $region122: #{tpu_custom_call.1} parent=75 // loop_footer_branch
          %895 = sbr.rel target = $region118
        $region123: #{tpu_custom_call.1} parent=75 // loop_exit
          _
        %1625 = vst [vmem:[%s773] sm:$0xff] %v901
        %v1626 = vld [vmem:[#allocation17] sm:$0xf]
        %v1627 = vld [vmem:[#allocation17 + $0x4] sm:$0xf]
        %v1628 = vld [vmem:[#allocation17 + $0x8] sm:$0xf]
        %v1629 = vld [vmem:[#allocation17 + $0xc] sm:$0xf]
        %v1630 = vld [vmem:[#allocation17 + $0x10] sm:$0xf]
        %v1631 = vld [vmem:[#allocation17 + $0x14] sm:$0xf]
        %v1632 = vld [vmem:[#allocation17 + $0x18] sm:$0xf]
        %v1633 = vld [vmem:[#allocation17 + $0x1c] sm:$0xf]
        %v1634 = vld [vmem:[#allocation17 + $0x20] sm:$0xf]
        %v1635 = vld [vmem:[#allocation17 + $0x24] sm:$0xf]
        %v1636 = vld [vmem:[#allocation17 + $0x28] sm:$0xf]
        %v1637 = vld [vmem:[#allocation17 + $0x2c] sm:$0xf]
        %v1638 = vld [vmem:[#allocation17 + $0x30] sm:$0xf]
        %v1639 = vld [vmem:[#allocation17 + $0x34] sm:$0xf]
        %v1640 = vld [vmem:[#allocation17 + $0x38] sm:$0xf]
        %v1641 = vld [vmem:[#allocation17 + $0x3c] sm:$0xf]
        %v1642 = vpack.c.bf16 %v901, %v901
        %v1643 = vld [vmem:[%s13] sm:$0x1]
        %v1645 = vperm.slane %v1643, 0
        %v1663 = vunpack.c.l.b16 %v1626
        %v1664 = vunpack.c.l.b16 %v1627
        %v1665 = vunpack.c.l.b16 %v1628
        %v1666 = vunpack.c.l.b16 %v1629
        %v1667 = vunpack.c.l.b16 %v1630
        %v1668 = vunpack.c.l.b16 %v1631
        %v1669 = vunpack.c.l.b16 %v1632
        %v1670 = vunpack.c.l.b16 %v1633
        %v1671 = vunpack.c.l.b16 %v1634
        %v1672 = vunpack.c.l.b16 %v1635
        %v1673 = vunpack.c.l.b16 %v1636
        %v1674 = vunpack.c.l.b16 %v1637
        %v1675 = vunpack.c.l.b16 %v1638
        %v1676 = vunpack.c.l.b16 %v1639
        %v1677 = vunpack.c.l.b16 %v1640
        %v1678 = vunpack.c.l.b16 %v1641
        %v1679 = vpack.c.b16 %v1664, %v1663
        %v1680 = vpack.c.b16 %v1666, %v1665
        %v1681 = vpack.c.b16 %v1668, %v1667
        %v1682 = vpack.c.b16 %v1670, %v1669
        %v1683 = vpack.c.b16 %v1672, %v1671
        %v1684 = vpack.c.b16 %v1674, %v1673
        %v1685 = vpack.c.b16 %v1676, %v1675
        %v1686 = vpack.c.b16 %v1678, %v1677
        %1695 = vmatpush.bf16.msra.mxu0 %v1686
        %1696 = vmatpush.bf16.msra.mxu0 %v1685
        %1697 = vmatpush.bf16.msra.mxu0 %v1684
        %1698 = vmatpush.bf16.msra.mxu0 %v1683
        %1699 = vmatpush.bf16.msra.mxu0 %v1682
        %1700 = vmatpush.bf16.msra.mxu0 %v1681
        %1701 = vmatpush.bf16.msra.mxu0 %v1680
        %1702 = vmatpush.bf16.msra.mxu0 %v1679
        %1703 = vmatmul.bf16.gmra.mxu0 %v1642
        %v1704 = vpop.f32.mrf.mxu0
        %v1705 = vadd.f32 %v1645, %v1704
        %v1706 = vpop.f32.mrf.mxu0
        %1707 = vdwg.mxu0
        %v1708 = vxor.u32 %v1705, 2147483648
        %v1709 = vmul.f32 %v1708, 1.442695
        %v1710 = vpow.pop %v1709
        %v1711 = vadd.f32 %v1710, 1.0
        %v1712 = vrcp.pop %v1711
        %v1713 = vmul.f32 %v1711, %v1712
        %v1714 = vsub.f32 1.0, %v1713
        %v1715 = vmul.f32 %v1712, %v1714
        %v1716 = vadd.f32 %v1712, %v1715
        %vm1717 = vweird.f32 %v1711
        %vm1718 = vweird.f32 %v1712
        %vm1719 = vmor %vm1717, %vm1718
        %v1720 = vsel %vm1719, %v1712, %v1716
        %v1721 = vand.u32 2147483647, %v1711
        %vm1722 = vcmp.eq.f32.partialorder %v1721, 8.507059e+37
        %v1723 = vand.u32 %v1711, 2147483648
        %v1724 = vor.u32 1.1754944e-38, %v1723
        %v1725 = vsel %vm1722, %v1724, %v1720
        %v1726 = vmul.f32 1.0, %v1725
        %1727 = vst [vmem:[%s759] sm:$0xff] %v1726
        %s1728 = sand.u32 %s368, 1
        %s1729 = scalar_lea.sflag [#allocation4], %s1728
        %s1730 = sand.u32 %s368, 1
        %s1731 = smul.addr %s1730, 8
        %s1732 = scalar_lea.vmem [#allocation19], %s1731
        %s1733 = sand.u32 %s46, 1
        %s1734 = scalar_lea.sflag [#allocation21], %s1733
        %s1735 = sand.u32 %s394, 1
        %s1736 = smul.addr %s1735, 8
        %s1737 = scalar_lea.vmem [#allocation20], %s1736
        %s1738 = sand.u32 %s46, 1
        %s1739 = scalar_lea.sflag [#allocation21], %s1738
        %s1740 = sand.u32 %s420, 1
        %s1741 = smul.addr %s1740, 8
        %s1742 = scalar_lea.vmem [#allocation22], %s1741
        // Predicated region
        $region124: #{tpu_custom_call.1} parent=75 // pred_check
          %p1743 = pneg %p378
        $region125: #{tpu_custom_call.1} parent=75 // pred_check_branch
          %1745 = sbr.rel (%p1743) target = $region127
        $region126: #{tpu_custom_call.1} parent=75 // pred_region
          %1747 = vsyncadd %s1729, 0
          %s1748 = smul.addr %s46, 8
          %s1749 = scalar_lea.hbm %s14, %s1748
          %s1751 = sshll.u32 %s1732, 4
          %s1752 = int_to_ptr.vmem [resolvable:$true] %s1751
          %s1753 = sshll.u32 %s1749, 4
          %s1754 = int_to_ptr.hbm [resolvable:$true] %s1753
          %1756 = dma.vmem_to_hbm [thread:$0]  %s1752, 128, %s1754, %s1729
        $region127: #{tpu_custom_call.1} parent=75 // pred_fallthru
          _
        // Predicated region
        $region128: #{tpu_custom_call.1} parent=75 // pred_check
          %p1757 = pneg %p404
        $region129: #{tpu_custom_call.1} parent=75 // pred_check_branch
          %1759 = sbr.rel (%p1757) target = $region131
        $region130: #{tpu_custom_call.1} parent=75 // pred_region
          %1761 = vsyncadd %s1734, 0
          %s1762 = smul.addr %s46, 4
          %s1763 = scalar_lea.hbm %s15, %s1762
          %s1764 = sshll.u32 %s1737, 4
          %s1765 = int_to_ptr.vmem [resolvable:$true] %s1764
          %s1766 = sshll.u32 %s1763, 4
          %s1767 = int_to_ptr.hbm [resolvable:$true] %s1766
          %1772 = dma.vmem_to_hbm [thread:$0]  %s1765, 128, %s1767, %s1734, 64, 128, 4
        $region131: #{tpu_custom_call.1} parent=75 // pred_fallthru
          _
        // Predicated region
        $region132: #{tpu_custom_call.1} parent=75 // pred_check
          %p1773 = pneg %p430
        $region133: #{tpu_custom_call.1} parent=75 // pred_check_branch
          %1775 = sbr.rel (%p1773) target = $region135
        $region134: #{tpu_custom_call.1} parent=75 // pred_region
          %1777 = vsyncadd %s1739, 0
          %s1778 = smul.addr %s46, 8
          %s1779 = scalar_lea.hbm %s16, %s1778
          %s1781 = sshll.u32 %s1742, 4
          %s1782 = int_to_ptr.vmem [resolvable:$true] %s1781
          %s1783 = sshll.u32 %s1779, 4
          %s1784 = int_to_ptr.hbm [resolvable:$true] %s1783
          %1786 = dma.vmem_to_hbm [thread:$0]  %s1782, 128, %s1784, %s1739
        $region135: #{tpu_custom_call.1} parent=75 // pred_fallthru
          _
      $region76: #{tpu_custom_call.1} parent=5 // pred_fallthru
        _
      %p1787 = scmp.le.s32.totalorder 2, %s41
      // Predicated region
      $region136: #{tpu_custom_call.1} parent=5 // pred_check
        %p1788 = pneg %p1787
      $region137: #{tpu_custom_call.1} parent=5 // pred_check_branch
        %1790 = sbr.rel (%p1788) target = $region139
      $region138: #{tpu_custom_call.1} parent=5 // pred_region
        %s1791 = ssub.s32 %s41, 2
        // Predicated region
        $region140: #{tpu_custom_call.1} parent=138 // pred_check
          %p1792 = pneg %p384
        $region141: #{tpu_custom_call.1} parent=138 // pred_check_branch
          %1794 = sbr.rel (%p1792) target = $region143
        $region142: #{tpu_custom_call.1} parent=138 // pred_region
          %s1795 = sand.u32 %s369, 1
          %s1796 = scalar_lea.sflag [#allocation4], %s1795
          %s1797 = sand.u32 %s369, 1
          %s1798 = smul.addr %s1797, 8
          %s1799 = scalar_lea.vmem [#allocation19], %s1798
          %1801 = dma.done %s1796, 128
        $region143: #{tpu_custom_call.1} parent=138 // pred_fallthru
          _
        // Predicated region
        $region144: #{tpu_custom_call.1} parent=138 // pred_check
          %p1802 = pneg %p410
        $region145: #{tpu_custom_call.1} parent=138 // pred_check_branch
          %1804 = sbr.rel (%p1802) target = $region147
        $region146: #{tpu_custom_call.1} parent=138 // pred_region
          %s1805 = sand.u32 %s47, 1
          %s1806 = scalar_lea.sflag [#allocation21], %s1805
          %s1807 = sand.u32 %s395, 1
          %s1808 = smul.addr %s1807, 8
          %s1809 = scalar_lea.vmem [#allocation20], %s1808
          %1811 = dma.done %s1806, 128
        $region147: #{tpu_custom_call.1} parent=138 // pred_fallthru
          _
        // Predicated region
        $region148: #{tpu_custom_call.1} parent=138 // pred_check
          %p1812 = pneg %p436
        $region149: #{tpu_custom_call.1} parent=138 // pred_check_branch
          %1814 = sbr.rel (%p1812) target = $region151
        $region150: #{tpu_custom_call.1} parent=138 // pred_region
          %s1815 = sand.u32 %s47, 1
          %s1816 = scalar_lea.sflag [#allocation21], %s1815
          %s1817 = sand.u32 %s421, 1
          %s1818 = smul.addr %s1817, 8
          %s1819 = scalar_lea.vmem [#allocation22], %s1818
          %1821 = dma.done %s1816, 128
        $region151: #{tpu_custom_call.1} parent=138 // pred_fallthru
          _
      $region139: #{tpu_custom_call.1} parent=5 // pred_fallthru
        _
    $region6: #{tpu_custom_call.1} parent=1 // loop_footer
      %s45 = sadd.s32 1, %s41
    $region7: #{tpu_custom_call.1} parent=1 // loop_footer_branch
      %40 = sbr.rel target = $region3
    $region8: #{tpu_custom_call.1} parent=1 // loop_exit
      _
    %1822 = vsyncpa [#allocation3], 1
    %s1823 = scalar_lea.sflag [#allocation3], 1
    %1824 = vsyncpa %s1823, 1
    %1825 = vsyncpa [#allocation6], 1
    %s1826 = scalar_lea.sflag [#allocation6], 1
    %1827 = vsyncpa %s1826, 1
    %1828 = vsyncpa [#allocation9], 1
    %s1829 = scalar_lea.sflag [#allocation9], 1
    %1830 = vsyncpa %s1829, 1
    %1831 = vsyncpa [#allocation12], 1
    %1832 = vsyncpa [#allocation15], 1
    %1833 = vsyncpa [#allocation18], 1
    %1834 = vsyncpa [#allocation4], 1
    %s1835 = scalar_lea.sflag [#allocation4], 1
    %1836 = vsyncpa %s1835, 1
    %1837 = vsyncpa [#allocation21], 1
    %s1838 = scalar_lea.sflag [#allocation21], 1
    %1839 = vsyncpa %s1838, 1

</llo_original>
